<compile_context>
chip_gen: v7x
topology: tpu7x:2x2x1
jax: 0.10.0
libtpu: 0.0.40
codegen_flags: <defaults>
</compile_context>

<pallas_src>
import math
import functools

import jax
import jax.numpy as jnp
from jax.experimental import pallas as pl
from jax.experimental.pallas import tpu as pltpu


_NEG_BIG = -1e30  # finite "minus infinity"


def _layernorm(h, gamma, beta, eps=1e-5):
    mu = jnp.mean(h, axis=-1, keepdims=True)
    var = jnp.mean((h - mu) ** 2, axis=-1, keepdims=True)
    return (h - mu) * jax.lax.rsqrt(var + eps) * gamma + beta


def _new_gelu(x):
    return 0.5 * x * (1.0 + jnp.tanh(
        math.sqrt(2.0 / math.pi) * (x + 0.044715 * x * x * x)))


# --------------------------------------------------------------------------- #
# Kernel 1: LN1 + fused QKV projection (done once per row, never recomputed).
# --------------------------------------------------------------------------- #
def _qkv_kernel(x_ref, ln1_g_ref, ln1_b_ref,
                w_q_ref, w_k_ref, w_v_ref,
                b_q_ref, b_k_ref, b_v_ref,
                q_ref, k_ref, v_ref, *, n_head):
    tt, C = x_ref.shape[1], x_ref.shape[2]
    hd = C // n_head
    scale = 1.0 / math.sqrt(hd)
    cdt = w_q_ref.dtype                                   # MXU compute dtype

    x = x_ref[0].astype(jnp.float32)                      # (tt, C)
    h = _layernorm(x, ln1_g_ref[...].astype(jnp.float32),
                   ln1_b_ref[...].astype(jnp.float32))
    hc = h.astype(cdt)

    def heads(t):                                         # (tt, C) -> (H, tt, hd)
        return jnp.transpose(t.reshape(tt, n_head, hd), (1, 0, 2))

    q = jnp.dot(hc, w_q_ref[...], preferred_element_type=jnp.float32) + b_q_ref[...]
    k = jnp.dot(hc, w_k_ref[...], preferred_element_type=jnp.float32) + b_k_ref[...]
    v = jnp.dot(hc, w_v_ref[...], preferred_element_type=jnp.float32) + b_v_ref[...]

    q_ref[0] = heads(q * scale).astype(q_ref.dtype)       # pre-scaled query
    k_ref[0] = heads(k).astype(k_ref.dtype)
    v_ref[0] = heads(v).astype(v_ref.dtype)


# --------------------------------------------------------------------------- #
# Kernel 2: flash-style causal attention + c_proj + residual 1.
# --------------------------------------------------------------------------- #
def _attn_kernel(x_ref, q_ref, k_ref, v_ref, w_ap_ref, b_ap_ref,
                 o_ref, m_sc, l_sc, acc_sc, *, tq, tk):
    qi = pl.program_id(1)
    ki = pl.program_id(2)
    cdt = q_ref.dtype

    @pl.when(ki == 0)
    def _():
        m_sc[...] = jnp.full(m_sc.shape, _NEG_BIG, jnp.float32)
        l_sc[...] = jnp.zeros(l_sc.shape, jnp.float32)
        acc_sc[...] = jnp.zeros(acc_sc.shape, jnp.float32)

    def flash_update(masked):
        q = q_ref[0]                                       # (H, tq, hd) bf16
        k = k_ref[0]                                       # (H, tk, hd) bf16
        v = v_ref[0]                                       # (H, tk, hd) bf16
        s = jnp.einsum("hqd,hkd->hqk", q, k,
                       preferred_element_type=jnp.float32)  # (H, tq, tk)
        if masked:
            # Only the diagonal tile needs the causal mask (tq == tk).
            rows = qi * tq + jax.lax.broadcasted_iota(jnp.int32, (1, tq, tk), 1)
            cols = ki * tk + jax.lax.broadcasted_iota(jnp.int32, (1, tq, tk), 2)
            s = jnp.where(cols <= rows, s, _NEG_BIG)
        m_prev = m_sc[...]
        m_new = jnp.maximum(m_prev, jnp.max(s, axis=-1, keepdims=True))
        alpha = jnp.exp(m_prev - m_new)
        # TODO(synk): bf16 exp would double EUP throughput on v6e/v7x; kept f32
        # to preserve the validated numerical margin vs the f32 reference.
        p = jnp.exp(s - m_new)
        l_sc[...] = alpha * l_sc[...] + jnp.sum(p, axis=-1, keepdims=True)
        acc_sc[...] = alpha * acc_sc[...] + jnp.einsum(
            "hqk,hkd->hqd", p.astype(cdt), v, preferred_element_type=jnp.float32)
        m_sc[...] = m_new

    # Fully-unmasked causal tiles: no iota / compare / select work.
    @pl.when(ki < qi)
    def _():
        flash_update(masked=False)

    # Diagonal tile: mask, then finalize (softmax normalize, c_proj, residual).
    @pl.when(ki == qi)
    def _():
        flash_update(masked=True)
        y = acc_sc[...] * pl.reciprocal(l_sc[...], approx=True)  # (H, tq, hd) f32
        n_head, _, hd = acc_sc.shape
        y = jnp.transpose(y, (1, 0, 2)).reshape(tq, n_head * hd)  # (tq, C)
        attn = jnp.dot(y.astype(cdt), w_ap_ref[...],
                       preferred_element_type=jnp.float32) + b_ap_ref[...]
        o_ref[0] = (x_ref[0].astype(jnp.float32) + attn).astype(o_ref.dtype)
    # Steps with ki > qi do nothing; their KV index_map is clamped to qi so no
    # DMA is issued for them either.


# --------------------------------------------------------------------------- #
# Kernel 3: LN2 + MLP (c_fc -> c_proj -> NewGELU, nn.Sequential order) + res 2.
# --------------------------------------------------------------------------- #
def _mlp_kernel(x1_ref, ln2_g_ref, ln2_b_ref,
                w_fc_ref, b_fc_ref, w_mp_ref, b_mp_ref, o_ref):
    cdt = w_fc_ref.dtype
    x1 = x1_ref[0].astype(jnp.float32)
    h2 = _layernorm(x1, ln2_g_ref[...].astype(jnp.float32),
                    ln2_b_ref[...].astype(jnp.float32))
    fc = jnp.dot(h2.astype(cdt), w_fc_ref[...],
                 preferred_element_type=jnp.float32) + b_fc_ref[...]   # (tq, 4C)
    pr = jnp.dot(fc.astype(cdt), w_mp_ref[...],
                 preferred_element_type=jnp.float32) + b_mp_ref[...]   # (tq, C)
    # NewGELU is applied AFTER c_proj — matches the spec's nn.Sequential order.
    # TODO(synk): attn_pdrop / resid_pdrop dropout layers are identity (inference).
    o_ref[0] = (x1 + _new_gelu(pr)).astype(o_ref.dtype)


# --------------------------------------------------------------------------- #
# Wrapper
# --------------------------------------------------------------------------- #
def _pick_tile(T):
    # 256-row tiles fill the v6e/v7x 256x256 MXU; T == 256 now keeps tq = 256.
    for t in (256, 128):
        if T >= t and T % t == 0:
            return t
    return T  # small sequence: single full-extent block


def _vmem_limit_bytes():
    cap = 64 << 20  # conservative default: smallest per-TC VMEM (v7x)
    try:
        cap = int(pltpu.get_tpu_info().vmem_capacity_bytes)
    except Exception:
        # Narrow fallback for the hardware-info query only (never hides a
        # kernel compile error); keeps the conservative 64 MiB assumption.
        pass
    return int(max(cap - (16 << 20), 32 << 20))  # ~16 MiB headroom for Mosaic


def gpt_block_forward(x, params, n_head, *, compute_dtype=jnp.bfloat16):
    B, T, C = x.shape
    assert C % n_head == 0
    hd = C // n_head
    tq = _pick_tile(T)
    tk = tq                       # square tiles: diagonal tile is ki == qi
    nq = T // tq
    nk = T // tk
    f32 = jnp.float32
    wsz = jnp.dtype(compute_dtype).itemsize
    xsz = x.dtype.itemsize
    vmem_limit = _vmem_limit_bytes()

    # Split the fused QKV projection host-side so no kernel takes sub-128-lane
    # column slices of the (C, 3C) weight.
    w_qkv, b_qkv = params["w_qkv"], params["b_qkv"]
    w_q, w_k, w_v = (w_qkv[:, i * C:(i + 1) * C] for i in range(3))
    b_q, b_k, b_v = (b_qkv[:, i * C:(i + 1) * C] for i in range(3))

    cw = lambda w: w.astype(compute_dtype)       # bf16 weights -> MXU, f32 accum

    def const2(shape):
        return pl.BlockSpec(shape, lambda b, ti: (0,) * len(shape))

    def const3(shape):
        return pl.BlockSpec(shape, lambda b, qi, ki: (0,) * len(shape))

    # ---------------- 1) LN1 + QKV projection (once per row) ----------------
    qkv_shape = jax.ShapeDtypeStruct((B, n_head, T, hd), compute_dtype)
    qkv_cost = pl.CostEstimate(
        flops=2 * B * T * C * 3 * C,
        transcendentals=B * T,
        bytes_accessed=B * T * C * xsz + 3 * B * T * C * wsz + 3 * C * (C + 1) * wsz)

    q, k, v = pl.pallas_call(
        functools.partial(_qkv_kernel, n_head=n_head),
        out_shape=(qkv_shape, qkv_shape, qkv_shape),
        grid=(B, nq),
        in_specs=[
            pl.BlockSpec((1, tq, C), lambda b, ti: (b, ti, 0)),       # x tile
            const2((1, C)), const2((1, C)),                           # ln_1 g, b
            const2((C, C)), const2((C, C)), const2((C, C)),           # W_q, W_k, W_v
            const2((1, C)), const2((1, C)), const2((1, C)),           # b_q, b_k, b_v
        ],
        out_specs=(
            pl.BlockSpec((1, n_head, tq, hd), lambda b, ti: (b, 0, ti, 0)),
            pl.BlockSpec((1, n_head, tq, hd), lambda b, ti: (b, 0, ti, 0)),
            pl.BlockSpec((1, n_head, tq, hd), lambda b, ti: (b, 0, ti, 0)),
        ),
        compiler_params=pltpu.CompilerParams(
            dimension_semantics=("parallel", "parallel"),
            vmem_limit_bytes=vmem_limit),
        cost_estimate=qkv_cost,
    )(x,
      params["ln1_g"].astype(f32), params["ln1_b"].astype(f32),
      cw(w_q), cw(w_k), cw(w_v),
      b_q.astype(f32), b_k.astype(f32), b_v.astype(f32))

    # ------------- 2) causal flash attention + c_proj + residual 1 -----------
    def kv_map(b, qi, ki):
        # Clamp future tiles to the diagonal: the block index does not change
        # for ki > qi, so Pallas issues no DMA for masked-out KV tiles.
        return (b, 0, jnp.minimum(ki, qi), 0)

    attn_cost = pl.CostEstimate(
        flops=2 * B * n_head * T * T * hd + 2 * B * T * C * C,
        transcendentals=B * n_head * T * T,
        bytes_accessed=(2 * B * T * C * xsz
                        + (1 + 2 * nq) * B * T * C * wsz      # Q once, K/V per qi
                        + C * (C + 1) * wsz))

    x1 = pl.pallas_call(
        functools.partial(_attn_kernel, tq=tq, tk=tk),
        out_shape=jax.ShapeDtypeStruct((B, T, C), x.dtype),
        grid=(B, nq, nk),
        in_specs=[
            pl.BlockSpec((1, tq, C), lambda b, qi, ki: (b, qi, 0)),   # x (residual)
            pl.BlockSpec((1, n_head, tq, hd), lambda b, qi, ki: (b, 0, qi, 0)),
            pl.BlockSpec((1, n_head, tk, hd), kv_map),                # K tiles
            pl.BlockSpec((1, n_head, tk, hd), kv_map),                # V tiles
            const3((C, C)), const3((1, C)),                           # c_proj W, b
        ],
        out_specs=pl.BlockSpec((1, tq, C), lambda b, qi, ki: (b, qi, 0)),
        scratch_shapes=[
            pltpu.VMEM((n_head, tq, 1), f32),                         # running max
            pltpu.VMEM((n_head, tq, 1), f32),                         # running sum
            pltpu.VMEM((n_head, tq, hd), f32),                        # output accum
        ],
        compiler_params=pltpu.CompilerParams(
            # Only B is "parallel": per-row work is even, so megacore splits on
            # batch; qi has triangular work and ki carries the accumulator.
            dimension_semantics=("parallel", "arbitrary", "arbitrary"),
            vmem_limit_bytes=vmem_limit),
        cost_estimate=attn_cost,
    )(x, q, k, v, cw(params["w_ap"]), params["b_ap"].astype(f32))

    # --------------------- 3) LN2 + MLP + residual 2 -------------------------
    mlp_cost = pl.CostEstimate(
        flops=2 * 2 * B * T * C * 4 * C,
        transcendentals=B * T * (C + 1),
        bytes_accessed=2 * B * T * C * xsz + (8 * C * C + 5 * C) * wsz)

    out = pl.pallas_call(
        _mlp_kernel,
        out_shape=jax.ShapeDtypeStruct((B, T, C), x.dtype),
        grid=(B, nq),
        in_specs=[
            pl.BlockSpec((1, tq, C), lambda b, ti: (b, ti, 0)),       # x1 tile
            const2((1, C)), const2((1, C)),                           # ln_2 g, b
            const2((C, 4 * C)), const2((1, 4 * C)),                   # c_fc W, b
            const2((4 * C, C)), const2((1, C)),                       # c_proj W, b
        ],
        out_specs=pl.BlockSpec((1, tq, C), lambda b, ti: (b, ti, 0)),
        compiler_params=pltpu.CompilerParams(
            dimension_semantics=("parallel", "parallel"),
            vmem_limit_bytes=vmem_limit),
        cost_estimate=mlp_cost,
    )(x1,
      params["ln2_g"].astype(f32), params["ln2_b"].astype(f32),
      cw(params["w_fc"]), params["b_fc"].astype(f32),
      cw(params["w_mp"]), params["b_mp"].astype(f32))

    return out


# --------------------------------------------------------------------------- #
# Pure-JAX reference (mirrors the PyTorch Block forward).
# --------------------------------------------------------------------------- #
def _reference_forward(x, p, n_head):
    B, T, C = x.shape
    hd = C // n_head

    def ln(h, g, b):
        mu = jnp.mean(h, axis=-1, keepdims=True)
        var = jnp.mean((h - mu) ** 2, axis=-1, keepdims=True)
        return (h - mu) * jax.lax.rsqrt(var + 1e-5) * g + b

    h = ln(x, p["ln1_g"], p["ln1_b"])
    qkv = h @ p["w_qkv"] + p["b_qkv"]
    q, k, v = jnp.split(qkv, 3, axis=-1)
    q = q.reshape(B, T, n_head, hd).transpose(0, 2, 1, 3)
    k = k.reshape(B, T, n_head, hd).transpose(0, 2, 1, 3)
    v = v.reshape(B, T, n_head, hd).transpose(0, 2, 1, 3)
    att = jnp.einsum("bhqd,bhkd->bhqk", q, k) / math.sqrt(hd)
    mask = jnp.tril(jnp.ones((T, T), bool))
    att = jnp.where(mask, att, -jnp.inf)
    att = jax.nn.softmax(att, axis=-1)
    y = jnp.einsum("bhqk,bhkd->bhqd", att, v).transpose(0, 2, 1, 3).reshape(B, T, C)
    x1 = x + (y @ p["w_ap"] + p["b_ap"])

    h2 = ln(x1, p["ln2_g"], p["ln2_b"])
    fc = h2 @ p["w_fc"] + p["b_fc"]
    pr = fc @ p["w_mp"] + p["b_mp"]
    gelu = 0.5 * pr * (1.0 + jnp.tanh(math.sqrt(2.0 / math.pi) * (pr + 0.044715 * pr ** 3)))
    return x1 + gelu


if __name__ == "__main__":
    # Small config: n_embd=32, n_head=4, block_size(T)=8, batch=2.
    # NOTE: C < 128 here means masked partial stores on the last dim; real GPT
    # widths (>= 768) are lane-aligned.  This config is a correctness check only.
    B, T, C, n_head = 2, 8, 32, 4
    ks = jax.random.split(jax.random.PRNGKey(0), 9)

    params = {
        "ln1_g": jnp.ones((1, C), jnp.float32),
        "ln1_b": jnp.zeros((1, C), jnp.float32),
        "w_qkv": 0.02 * jax.random.normal(ks[0], (C, 3 * C), jnp.float32),
        "b_qkv": 0.01 * jax.random.normal(ks[1], (1, 3 * C), jnp.float32),
        "w_ap": 0.02 * jax.random.normal(ks[2], (C, C), jnp.float32),
        "b_ap": 0.01 * jax.random.normal(ks[3], (1, C), jnp.float32),
        "ln2_g": jnp.ones((1, C), jnp.float32),
        "ln2_b": jnp.zeros((1, C), jnp.float32),
        "w_fc": 0.02 * jax.random.normal(ks[4], (C, 4 * C), jnp.float32),
        "b_fc": 0.01 * jax.random.normal(ks[5], (1, 4 * C), jnp.float32),
        "w_mp": 0.02 * jax.random.normal(ks[6], (4 * C, C), jnp.float32),
        "b_mp": 0.01 * jax.random.normal(ks[7], (1, C), jnp.float32),
    }

    x = jax.random.normal(ks[8], (B, T, C), jnp.float32)

    out = gpt_block_forward(x, params, n_head)
    out = jax.block_until_ready(out)

    ref = _reference_forward(x, params, n_head)
    assert out.shape == (B, T, C)
    # bf16 matmul operands with f32 accumulation vs the pure-f32 reference.
    assert jnp.allclose(out, ref, atol=2e-2, rtol=2e-2), "mismatch vs JAX reference"

    print("KERNEL_OK")
</pallas_src>

<mosaic_0001>
module attributes {stable_mosaic.version = 11 : i64} {
  func.func @_qkv_kernel(%arg0: i32, %arg1: i32, %arg2: memref<1x8x32xf32, #tpu.memory_space<vmem>>, %arg3: memref<1x32xf32, #tpu.memory_space<vmem>>, %arg4: memref<1x32xf32, #tpu.memory_space<vmem>>, %arg5: memref<32x32xbf16, #tpu.memory_space<vmem>>, %arg6: memref<32x32xbf16, #tpu.memory_space<vmem>>, %arg7: memref<32x32xbf16, #tpu.memory_space<vmem>>, %arg8: memref<1x32xf32, #tpu.memory_space<vmem>>, %arg9: memref<1x32xf32, #tpu.memory_space<vmem>>, %arg10: memref<1x32xf32, #tpu.memory_space<vmem>>, %arg11: memref<1x4x8x8xbf16, #tpu.memory_space<vmem>>, %arg12: memref<1x4x8x8xbf16, #tpu.memory_space<vmem>>, %arg13: memref<1x4x8x8xbf16, #tpu.memory_space<vmem>>) attributes {dimension_semantics = [#tpu.dimension_semantics<parallel>, #tpu.dimension_semantics<parallel>], iteration_bounds = array<i64: 2, 1>, scalar_prefetch = 0 : i64, scratch_operands = 0 : i64, tpu.core_type = #tpu.core_type<tc>, window_params = [{transform_indices = @transform_0, window_bounds = array<i64: 1, 8, 32>}, {pipeline_mode = #tpu.pipeline_mode<synchronous>, transform_indices = @transform_1, window_bounds = array<i64: 1, 32>}, {pipeline_mode = #tpu.pipeline_mode<synchronous>, transform_indices = @transform_2, window_bounds = array<i64: 1, 32>}, {pipeline_mode = #tpu.pipeline_mode<synchronous>, transform_indices = @transform_3, window_bounds = array<i64: 32, 32>}, {pipeline_mode = #tpu.pipeline_mode<synchronous>, transform_indices = @transform_4, window_bounds = array<i64: 32, 32>}, {pipeline_mode = #tpu.pipeline_mode<synchronous>, transform_indices = @transform_5, window_bounds = array<i64: 32, 32>}, {pipeline_mode = #tpu.pipeline_mode<synchronous>, transform_indices = @transform_6, window_bounds = array<i64: 1, 32>}, {pipeline_mode = #tpu.pipeline_mode<synchronous>, transform_indices = @transform_7, window_bounds = array<i64: 1, 32>}, {pipeline_mode = #tpu.pipeline_mode<synchronous>, transform_indices = @transform_8, window_bounds = array<i64: 1, 32>}, {transform_indices = @transform_9, window_bounds = array<i64: 1, 4, 8, 8>}, {transform_indices = @transform_10, window_bounds = array<i64: 1, 4, 8, 8>}, {transform_indices = @transform_11, window_bounds = array<i64: 1, 4, 8, 8>}]} {
    %c0 = arith.constant 0 : index
    %c0_0 = arith.constant 0 : index
    %c0_1 = arith.constant 0 : index
    %0 = vector.load %arg2[%c0, %c0_0, %c0_1] : memref<1x8x32xf32, #tpu.memory_space<vmem>>, vector<1x8x32xf32>
    %1 = vector.shape_cast %0 : vector<1x8x32xf32> to vector<8x32xf32>
    %c0_2 = arith.constant 0 : index
    %c0_3 = arith.constant 0 : index
    %2 = vector.load %arg3[%c0_2, %c0_3] : memref<1x32xf32, #tpu.memory_space<vmem>>, vector<1x32xf32>
    %c0_4 = arith.constant 0 : index
    %c0_5 = arith.constant 0 : index
    %3 = vector.load %arg4[%c0_4, %c0_5] : memref<1x32xf32, #tpu.memory_space<vmem>>, vector<1x32xf32>
    %cst = arith.constant dense<0.000000e+00> : vector<8xf32>
    %4 = vector.multi_reduction <add>, %1, %cst [1] : vector<8x32xf32> to vector<8xf32>
    %5 = vector.shape_cast %4 : vector<8xf32> to vector<8x1xf32>
    %cst_6 = arith.constant 3.200000e+01 : f32
    %6 = vector.broadcast %cst_6 : f32 to vector<8x1xf32>
    %7 = arith.divf %5, %6 : vector<8x1xf32>
    %8 = vector.broadcast %7 : vector<8x1xf32> to vector<8x32xf32>
    %9 = arith.subf %1, %8 : vector<8x32xf32>
    %10 = arith.mulf %9, %9 : vector<8x32xf32>
    %cst_7 = arith.constant dense<0.000000e+00> : vector<8xf32>
    %11 = vector.multi_reduction <add>, %10, %cst_7 [1] : vector<8x32xf32> to vector<8xf32>
    %12 = vector.shape_cast %11 : vector<8xf32> to vector<8x1xf32>
    %cst_8 = arith.constant 3.200000e+01 : f32
    %13 = vector.broadcast %cst_8 : f32 to vector<8x1xf32>
    %14 = arith.divf %12, %13 : vector<8x1xf32>
    %15 = vector.broadcast %7 : vector<8x1xf32> to vector<8x32xf32>
    %16 = arith.subf %1, %15 : vector<8x32xf32>
    %cst_9 = arith.constant 9.99999974E-6 : f32
    %17 = vector.broadcast %cst_9 : f32 to vector<8x1xf32>
    %18 = arith.addf %14, %17 : vector<8x1xf32>
    %19 = math.rsqrt %18 : vector<8x1xf32>
    %20 = vector.broadcast %19 : vector<8x1xf32> to vector<8x32xf32>
    %21 = arith.mulf %16, %20 : vector<8x32xf32>
    %22 = vector.broadcast %2 : vector<1x32xf32> to vector<8x32xf32>
    %23 = arith.mulf %21, %22 : vector<8x32xf32>
    %24 = vector.broadcast %3 : vector<1x32xf32> to vector<8x32xf32>
    %25 = arith.addf %23, %24 : vector<8x32xf32>
    %26 = arith.truncf %25 : vector<8x32xf32> to vector<8x32xbf16>
    %c0_10 = arith.constant 0 : index
    %c0_11 = arith.constant 0 : index
    %27 = vector.load %arg5[%c0_10, %c0_11] : memref<32x32xbf16, #tpu.memory_space<vmem>>, vector<32x32xbf16>
    %cst_12 = arith.constant dense<0.000000e+00> : vector<8x32xf32>
    %28 = tpu.matmul %26, %27, %cst_12 {dimension_numbers = #tpu.dot_dimension_numbers<[1], [0], [0], [1], [0, 0, 1, 1], [], []>} : vector<8x32xbf16>, vector<32x32xbf16>, vector<8x32xf32> -> vector<8x32xf32>
    %c0_13 = arith.constant 0 : index
    %c0_14 = arith.constant 0 : index
    %29 = vector.load %arg8[%c0_13, %c0_14] : memref<1x32xf32, #tpu.memory_space<vmem>>, vector<1x32xf32>
    %30 = vector.broadcast %29 : vector<1x32xf32> to vector<8x32xf32>
    %31 = arith.addf %28, %30 : vector<8x32xf32>
    %c0_15 = arith.constant 0 : index
    %c0_16 = arith.constant 0 : index
    %32 = vector.load %arg6[%c0_15, %c0_16] : memref<32x32xbf16, #tpu.memory_space<vmem>>, vector<32x32xbf16>
    %cst_17 = arith.constant dense<0.000000e+00> : vector<8x32xf32>
    %33 = tpu.matmul %26, %32, %cst_17 {dimension_numbers = #tpu.dot_dimension_numbers<[1], [0], [0], [1], [0, 0, 1, 1], [], []>} : vector<8x32xbf16>, vector<32x32xbf16>, vector<8x32xf32> -> vector<8x32xf32>
    %c0_18 = arith.constant 0 : index
    %c0_19 = arith.constant 0 : index
    %34 = vector.load %arg9[%c0_18, %c0_19] : memref<1x32xf32, #tpu.memory_space<vmem>>, vector<1x32xf32>
    %35 = vector.broadcast %34 : vector<1x32xf32> to vector<8x32xf32>
    %36 = arith.addf %33, %35 : vector<8x32xf32>
    %c0_20 = arith.constant 0 : index
    %c0_21 = arith.constant 0 : index
    %37 = vector.load %arg7[%c0_20, %c0_21] : memref<32x32xbf16, #tpu.memory_space<vmem>>, vector<32x32xbf16>
    %cst_22 = arith.constant dense<0.000000e+00> : vector<8x32xf32>
    %38 = tpu.matmul %26, %37, %cst_22 {dimension_numbers = #tpu.dot_dimension_numbers<[1], [0], [0], [1], [0, 0, 1, 1], [], []>} : vector<8x32xbf16>, vector<32x32xbf16>, vector<8x32xf32> -> vector<8x32xf32>
    %c0_23 = arith.constant 0 : index
    %c0_24 = arith.constant 0 : index
    %39 = vector.load %arg10[%c0_23, %c0_24] : memref<1x32xf32, #tpu.memory_space<vmem>>, vector<1x32xf32>
    %40 = vector.broadcast %39 : vector<1x32xf32> to vector<8x32xf32>
    %41 = arith.addf %38, %40 : vector<8x32xf32>
    %cst_25 = arith.constant 0.353553385 : f32
    %42 = vector.broadcast %cst_25 : f32 to vector<8x32xf32>
    %43 = arith.mulf %31, %42 : vector<8x32xf32>
    %44 = vector.shape_cast %43 : vector<8x32xf32> to vector<8x4x8xf32>
    %45 = tpu.transpose %44, [1, 0, 2] : vector<8x4x8xf32> -> vector<4x8x8xf32>
    %46 = arith.truncf %45 : vector<4x8x8xf32> to vector<4x8x8xbf16>
    %c0_26 = arith.constant 0 : index
    %c0_27 = arith.constant 0 : index
    %c0_28 = arith.constant 0 : index
    %c0_29 = arith.constant 0 : index
    %47 = vector.load %arg11[%c0_26, %c0_27, %c0_28, %c0_29] : memref<1x4x8x8xbf16, #tpu.memory_space<vmem>>, vector<1x4x8x8xbf16>
    %48 = vector.shape_cast %47 : vector<1x4x8x8xbf16> to vector<4x8x8xbf16>
    %49 = vector.shape_cast %46 : vector<4x8x8xbf16> to vector<1x4x8x8xbf16>
    tpu.vector_store %arg11[%c0_26, %c0_27, %c0_28, %c0_29], %49 {strides = array<i32>} : memref<1x4x8x8xbf16, #tpu.memory_space<vmem>>, vector<1x4x8x8xbf16>,
    %50 = vector.shape_cast %36 : vector<8x32xf32> to vector<8x4x8xf32>
    %51 = tpu.transpose %50, [1, 0, 2] : vector<8x4x8xf32> -> vector<4x8x8xf32>
    %52 = arith.truncf %51 : vector<4x8x8xf32> to vector<4x8x8xbf16>
    %c0_30 = arith.constant 0 : index
    %c0_31 = arith.constant 0 : index
    %c0_32 = arith.constant 0 : index
    %c0_33 = arith.constant 0 : index
    %53 = vector.load %arg12[%c0_30, %c0_31, %c0_32, %c0_33] : memref<1x4x8x8xbf16, #tpu.memory_space<vmem>>, vector<1x4x8x8xbf16>
    %54 = vector.shape_cast %53 : vector<1x4x8x8xbf16> to vector<4x8x8xbf16>
    %55 = vector.shape_cast %52 : vector<4x8x8xbf16> to vector<1x4x8x8xbf16>
    tpu.vector_store %arg12[%c0_30, %c0_31, %c0_32, %c0_33], %55 {strides = array<i32>} : memref<1x4x8x8xbf16, #tpu.memory_space<vmem>>, vector<1x4x8x8xbf16>,
    %56 = vector.shape_cast %41 : vector<8x32xf32> to vector<8x4x8xf32>
    %57 = tpu.transpose %56, [1, 0, 2] : vector<8x4x8xf32> -> vector<4x8x8xf32>
    %58 = arith.truncf %57 : vector<4x8x8xf32> to vector<4x8x8xbf16>
    %c0_34 = arith.constant 0 : index
    %c0_35 = arith.constant 0 : index
    %c0_36 = arith.constant 0 : index
    %c0_37 = arith.constant 0 : index
    %59 = vector.load %arg13[%c0_34, %c0_35, %c0_36, %c0_37] : memref<1x4x8x8xbf16, #tpu.memory_space<vmem>>, vector<1x4x8x8xbf16>
    %60 = vector.shape_cast %59 : vector<1x4x8x8xbf16> to vector<4x8x8xbf16>
    %61 = vector.shape_cast %58 : vector<4x8x8xbf16> to vector<1x4x8x8xbf16>
    tpu.vector_store %arg13[%c0_34, %c0_35, %c0_36, %c0_37], %61 {strides = array<i32>} : memref<1x4x8x8xbf16, #tpu.memory_space<vmem>>, vector<1x4x8x8xbf16>,
    return
  }
  func.func @transform_0(%arg0: i32, %arg1: i32) -> (i32, i32, i32) {
    %c0_i32 = arith.constant 0 : i32
    %c0_i32_0 = arith.constant 0 : i32
    return %arg0, %arg1, %c0_i32 : i32, i32, i32
  }
  func.func @transform_1(%arg0: i32, %arg1: i32) -> (i32, i32) {
    %c0_i32 = arith.constant 0 : i32
    %c0_i32_0 = arith.constant 0 : i32
    %c0_i32_1 = arith.constant 0 : i32
    return %c0_i32, %c0_i32_0 : i32, i32
  }
  func.func @transform_2(%arg0: i32, %arg1: i32) -> (i32, i32) {
    %c0_i32 = arith.constant 0 : i32
    %c0_i32_0 = arith.constant 0 : i32
    %c0_i32_1 = arith.constant 0 : i32
    return %c0_i32, %c0_i32_0 : i32, i32
  }
  func.func @transform_3(%arg0: i32, %arg1: i32) -> (i32, i32) {
    %c0_i32 = arith.constant 0 : i32
    %c0_i32_0 = arith.constant 0 : i32
    %c0_i32_1 = arith.constant 0 : i32
    return %c0_i32, %c0_i32_0 : i32, i32
  }
  func.func @transform_4(%arg0: i32, %arg1: i32) -> (i32, i32) {
    %c0_i32 = arith.constant 0 : i32
    %c0_i32_0 = arith.constant 0 : i32
    %c0_i32_1 = arith.constant 0 : i32
    return %c0_i32, %c0_i32_0 : i32, i32
  }
  func.func @transform_5(%arg0: i32, %arg1: i32) -> (i32, i32) {
    %c0_i32 = arith.constant 0 : i32
    %c0_i32_0 = arith.constant 0 : i32
    %c0_i32_1 = arith.constant 0 : i32
    return %c0_i32, %c0_i32_0 : i32, i32
  }
  func.func @transform_6(%arg0: i32, %arg1: i32) -> (i32, i32) {
    %c0_i32 = arith.constant 0 : i32
    %c0_i32_0 = arith.constant 0 : i32
    %c0_i32_1 = arith.constant 0 : i32
    return %c0_i32, %c0_i32_0 : i32, i32
  }
  func.func @transform_7(%arg0: i32, %arg1: i32) -> (i32, i32) {
    %c0_i32 = arith.constant 0 : i32
    %c0_i32_0 = arith.constant 0 : i32
    %c0_i32_1 = arith.constant 0 : i32
    return %c0_i32, %c0_i32_0 : i32, i32
  }
  func.func @transform_8(%arg0: i32, %arg1: i32) -> (i32, i32) {
    %c0_i32 = arith.constant 0 : i32
    %c0_i32_0 = arith.constant 0 : i32
    %c0_i32_1 = arith.constant 0 : i32
    return %c0_i32, %c0_i32_0 : i32, i32
  }
  func.func @transform_9(%arg0: i32, %arg1: i32) -> (i32, i32, i32, i32) {
    %c0_i32 = arith.constant 0 : i32
    %c0_i32_0 = arith.constant 0 : i32
    %c0_i32_1 = arith.constant 0 : i32
    return %arg0, %c0_i32, %arg1, %c0_i32_0 : i32, i32, i32, i32
  }
  func.func @transform_10(%arg0: i32, %arg1: i32) -> (i32, i32, i32, i32) {
    %c0_i32 = arith.constant 0 : i32
    %c0_i32_0 = arith.constant 0 : i32
    %c0_i32_1 = arith.constant 0 : i32
    return %arg0, %c0_i32, %arg1, %c0_i32_0 : i32, i32, i32, i32
  }
  func.func @transform_11(%arg0: i32, %arg1: i32) -> (i32, i32, i32, i32) {
    %c0_i32 = arith.constant 0 : i32
    %c0_i32_0 = arith.constant 0 : i32
    %c0_i32_1 = arith.constant 0 : i32
    return %arg0, %c0_i32, %arg1, %c0_i32_0 : i32, i32, i32, i32
  }
}

</mosaic_0001>

<llo_original>
// kernel: tpu_custom_call.1
$region0: #{tpu_custom_call.1}
  #allocation0 [shape = 'u32[]', space=smem, size = 0x4, offset = 0x4, fixed_abs, tag = 'smem constant byte address 0x4 - core index']
  #allocation1 [shape = 'u32[144,128]{1,0:T(1,128)}', space=vmem, size = 0x12000, scoped, tag = 'internal scratch']
  %s0 = inlined_call_operand.hbm [shape: f32[2,8,32], index: 0, kind: input, shape index: {}]
  %s1 = inlined_call_operand.vmem [shape: f32[1,32], index: 1, kind: input, shape index: {}]
  %s2 = inlined_call_operand.vmem [shape: f32[1,32], index: 2, kind: input, shape index: {}]
  %s3 = inlined_call_operand.hbm [shape: bf16[32,32], index: 3, kind: input, shape index: {}]
  %s4 = inlined_call_operand.hbm [shape: bf16[32,32], index: 4, kind: input, shape index: {}]
  %s5 = inlined_call_operand.vmem [shape: bf16[32,32], index: 5, kind: input, shape index: {}]
  %s6 = inlined_call_operand.vmem [shape: f32[1,32], index: 6, kind: input, shape index: {}]
  %s7 = inlined_call_operand.vmem [shape: f32[1,32], index: 7, kind: input, shape index: {}]
  %s8 = inlined_call_operand.vmem [shape: f32[1,32], index: 8, kind: input, shape index: {}]
  %s9 = inlined_call_operand.hbm [shape: bf16[2,4,8,8], index: 9, kind: output, shape index: {0}]
  %s10 = inlined_call_operand.hbm [shape: bf16[2,4,8,8], index: 10, kind: output, shape index: {1}]
  %s11 = inlined_call_operand.hbm [shape: bf16[2,4,8,8], index: 11, kind: output, shape index: {2}]
  %12 = xla_tuple %s9, %s10, %s11
  %s13 = sld [smem:[#allocation0]]
  $region97: #{tpu_custom_call.1} parent=0
    _
  %s15 = ssub.s32 1, %s13
  %s16 = scalar_select 0, %s15, %s13
  $region1: #{tpu_custom_call.1} parent=0
    #allocation2 [shape = 'u8[8192]{0}', space=vmem, size = 0x2000, scoped, tag = 'input window, operand 0']
    #allocation3 [shape = 's32[2]{0}', space=sflag, size = 0x8, scoped, tag = 'scoped memory for tpu_custom_call.1']
    #allocation4 [shape = 's32[2]{0}', space=sflag, size = 0x8, scoped, tag = 'scoped memory for tpu_custom_call.1']
    #allocation5 [shape = 'u8[8192]{0}', space=vmem, size = 0x2000, scoped, tag = 'input window, operand 3, single buffered']
    #allocation6 [shape = 's32[1]{0}', space=sflag, size = 0x4, scoped, tag = 'scoped memory for tpu_custom_call.1']
    #allocation7 [shape = 'u8[8192]{0}', space=vmem, size = 0x2000, scoped, tag = 'input window, operand 4, single buffered']
    #allocation8 [shape = 'u8[16384]{0}', space=vmem, size = 0x4000, scoped, tag = 'output window, operand 0']
    #allocation9 [shape = 'u8[16384]{0}', space=vmem, size = 0x4000, scoped, tag = 'output window, operand 1']
    #allocation10 [shape = 's32[2]{0}', space=sflag, size = 0x8, scoped, tag = 'scoped memory for tpu_custom_call.1']
    #allocation11 [shape = 'u8[16384]{0}', space=vmem, size = 0x4000, scoped, tag = 'output window, operand 2']
    %17 = vsyncpa [#allocation3], 0
    %s18 = scalar_lea.sflag [#allocation3], 1
    %19 = vsyncpa %s18, 0
    %20 = vsyncpa [#allocation6], 0
    %21 = vsyncpa [#allocation4], 0
    %s22 = scalar_lea.sflag [#allocation4], 1
    %23 = vsyncpa %s22, 0
    %24 = vsyncpa [#allocation10], 0
    %s25 = scalar_lea.sflag [#allocation10], 1
    %26 = vsyncpa %s25, 0
    loop: start=0, step=1, limit=4
    $region2: #{tpu_custom_call.1} parent=1 // loop_pre_header
      _
    $region3: #{tpu_custom_call.1} parent=1 // loop_header
      %s28 = sphi 0, %s32
      %p29 = scmp.ge.s32.totalorder %s28, 4
      %s35 = sphi 0, %s47
      %s36 = sphi 0, %s43
      %s37 = sphi 0, %s35
      %s38 = sphi 0, %s36
      %s39 = sphi 0, %s37
      %s40 = sphi 0, %s38
      %s52 = sphi 0, %s54
      %s55 = sphi 0, %s52
      %s56 = sphi 0, %s55
      %s72 = sphi 0, %s56
      %s76 = sphi 0, %s76
      %s78 = sphi 0, %s76
      %s79 = sphi 0, %s78
      %s93 = sphi 0, %s79
      %s97 = sphi 0, %s97
      %s99 = sphi 0, %s97
      %s100 = sphi 0, %s99
      %s114 = sphi 0, %s100
      %s118 = sphi 0, %s118
      %s120 = sphi 0, %s118
      %s121 = sphi 0, %s120
      %s135 = sphi 0, %s121
      %s139 = sphi 0, %s139
      %s141 = sphi 0, %s139
      %s142 = sphi 0, %s141
      %s156 = sphi 0, %s142
      %s160 = sphi 0, %s160
      %s162 = sphi 0, %s160
      %s163 = sphi 0, %s162
      %s177 = sphi 0, %s163
      %s181 = sphi 0, %s181
      %s183 = sphi 0, %s181
      %s184 = sphi 0, %s183
      %s198 = sphi 0, %s184
      %s202 = sphi 0, %s202
      %s204 = sphi 0, %s202
      %s205 = sphi 0, %s204
      %s219 = sphi 0, %s205
      %s223 = sphi 0, %s223
      %s225 = sphi 0, %s223
      %s226 = sphi 0, %s225
      %s240 = sphi 0, %s226
      %s248 = sphi 0, %s250
      %s251 = sphi 0, %s248
      %s252 = sphi 0, %s251
      %s268 = sphi 0, %s252
      %s276 = sphi 0, %s278
      %s279 = sphi 0, %s276
      %s280 = sphi 0, %s279
      %s296 = sphi 0, %s280
      %s304 = sphi 0, %s306
      %s307 = sphi 0, %s304
      %s308 = sphi 0, %s307
      %s324 = sphi 0, %s308
    $region4: #{tpu_custom_call.1} parent=1 // loop_header_branch
      %31 = sbr.rel (%p29) target = $region8
    $region5: #{tpu_custom_call.1} parent=1 // loop_body
      %s33 = ssub.s32 %s28, 1
      %s34 = ssub.s32 %s28, 2
      %s41 = sadd.s32 1, %s36
      %p42 = scmp.ge.s32.totalorder %s41, 1
      %s43 = scalar_select %p42, 0, %s41
      %s44 = sadd.s32 1, %s35
      %s45 = scalar_select %p42, %s44, %s35
      %p46 = scmp.ge.s32.totalorder %s45, 2
      %s47 = scalar_select %p46, 0, %s45
      %s48 = ssub.s32 %s35, %s47
      %s49 = ssub.s32 %s36, %s43
      %s50 = sor.u32 %s48, %s49
      %p51 = scmp.eq.s32.totalorder %s50, 0
      %s53 = sadd.s32 %s52, 1
      %s54 = scalar_select %p51, %s52, %s53
      %p57 = pneg %p51
      %p58 = scmp.eq.s32.totalorder %s28, 1
      %p59 = por %p57, %p58
      %p60 = scmp.ne.s32.totalorder %s52, %s55
      %p61 = scmp.eq.s32.totalorder %s28, 0
      %p62 = por %p60, %p61
      %p63 = scmp.ne.s32.totalorder %s52, %s55
      %p64 = scmp.eq.s32.totalorder %s33, 1
      %p65 = por %p63, %p64
      %p66 = scmp.ne.s32.totalorder %s55, %s56
      %p67 = scmp.eq.s32.totalorder %s33, 0
      %p68 = por %p66, %p67
      %p69 = scmp.ne.s32.totalorder %s55, %s56
      %p70 = scmp.eq.s32.totalorder %s34, 1
      %p71 = por %p69, %p70
      %p73 = scmp.ne.s32.totalorder %s56, %s72
      %p74 = scmp.eq.s32.totalorder %s34, 0
      %p75 = por %p73, %p74
      %s77 = sadd.s32 %s76, 1
      %p80 = scmp.eq.s32.totalorder %s28, 1
      %p81 = scmp.ne.s32.totalorder %s76, %s78
      %p82 = scmp.eq.s32.totalorder %s28, 0
      %p83 = por %p81, %p82
      %p84 = scmp.ne.s32.totalorder %s76, %s78
      %p85 = scmp.eq.s32.totalorder %s33, 1
      %p86 = por %p84, %p85
      %p87 = scmp.ne.s32.totalorder %s78, %s79
      %p88 = scmp.eq.s32.totalorder %s33, 0
      %p89 = por %p87, %p88
      %p90 = scmp.ne.s32.totalorder %s78, %s79
      %p91 = scmp.eq.s32.totalorder %s34, 1
      %p92 = por %p90, %p91
      %p94 = scmp.ne.s32.totalorder %s79, %s93
      %p95 = scmp.eq.s32.totalorder %s34, 0
      %p96 = por %p94, %p95
      %s98 = sadd.s32 %s97, 1
      %p101 = scmp.eq.s32.totalorder %s28, 1
      %p102 = scmp.ne.s32.totalorder %s97, %s99
      %p103 = scmp.eq.s32.totalorder %s28, 0
      %p104 = por %p102, %p103
      %p105 = scmp.ne.s32.totalorder %s97, %s99
      %p106 = scmp.eq.s32.totalorder %s33, 1
      %p107 = por %p105, %p106
      %p108 = scmp.ne.s32.totalorder %s99, %s100
      %p109 = scmp.eq.s32.totalorder %s33, 0
      %p110 = por %p108, %p109
      %p111 = scmp.ne.s32.totalorder %s99, %s100
      %p112 = scmp.eq.s32.totalorder %s34, 1
      %p113 = por %p111, %p112
      %p115 = scmp.ne.s32.totalorder %s100, %s114
      %p116 = scmp.eq.s32.totalorder %s34, 0
      %p117 = por %p115, %p116
      %s119 = sadd.s32 %s118, 1
      %p122 = scmp.eq.s32.totalorder %s28, 1
      %p123 = scmp.ne.s32.totalorder %s118, %s120
      %p124 = scmp.eq.s32.totalorder %s28, 0
      %p125 = por %p123, %p124
      %p126 = scmp.ne.s32.totalorder %s118, %s120
      %p127 = scmp.eq.s32.totalorder %s33, 1
      %p128 = por %p126, %p127
      %p129 = scmp.ne.s32.totalorder %s120, %s121
      %p130 = scmp.eq.s32.totalorder %s33, 0
      %p131 = por %p129, %p130
      %p132 = scmp.ne.s32.totalorder %s120, %s121
      %p133 = scmp.eq.s32.totalorder %s34, 1
      %p134 = por %p132, %p133
      %p136 = scmp.ne.s32.totalorder %s121, %s135
      %p137 = scmp.eq.s32.totalorder %s34, 0
      %p138 = por %p136, %p137
      %s140 = sadd.s32 %s139, 1
      %p143 = scmp.eq.s32.totalorder %s28, 1
      %p144 = scmp.ne.s32.totalorder %s139, %s141
      %p145 = scmp.eq.s32.totalorder %s28, 0
      %p146 = por %p144, %p145
      %p147 = scmp.ne.s32.totalorder %s139, %s141
      %p148 = scmp.eq.s32.totalorder %s33, 1
      %p149 = por %p147, %p148
      %p150 = scmp.ne.s32.totalorder %s141, %s142
      %p151 = scmp.eq.s32.totalorder %s33, 0
      %p152 = por %p150, %p151
      %p153 = scmp.ne.s32.totalorder %s141, %s142
      %p154 = scmp.eq.s32.totalorder %s34, 1
      %p155 = por %p153, %p154
      %p157 = scmp.ne.s32.totalorder %s142, %s156
      %p158 = scmp.eq.s32.totalorder %s34, 0
      %p159 = por %p157, %p158
      %s161 = sadd.s32 %s160, 1
      %p164 = scmp.eq.s32.totalorder %s28, 1
      %p165 = scmp.ne.s32.totalorder %s160, %s162
      %p166 = scmp.eq.s32.totalorder %s28, 0
      %p167 = por %p165, %p166
      %p168 = scmp.ne.s32.totalorder %s160, %s162
      %p169 = scmp.eq.s32.totalorder %s33, 1
      %p170 = por %p168, %p169
      %p171 = scmp.ne.s32.totalorder %s162, %s163
      %p172 = scmp.eq.s32.totalorder %s33, 0
      %p173 = por %p171, %p172
      %p174 = scmp.ne.s32.totalorder %s162, %s163
      %p175 = scmp.eq.s32.totalorder %s34, 1
      %p176 = por %p174, %p175
      %p178 = scmp.ne.s32.totalorder %s163, %s177
      %p179 = scmp.eq.s32.totalorder %s34, 0
      %p180 = por %p178, %p179
      %s182 = sadd.s32 %s181, 1
      %p185 = scmp.eq.s32.totalorder %s28, 1
      %p186 = scmp.ne.s32.totalorder %s181, %s183
      %p187 = scmp.eq.s32.totalorder %s28, 0
      %p188 = por %p186, %p187
      %p189 = scmp.ne.s32.totalorder %s181, %s183
      %p190 = scmp.eq.s32.totalorder %s33, 1
      %p191 = por %p189, %p190
      %p192 = scmp.ne.s32.totalorder %s183, %s184
      %p193 = scmp.eq.s32.totalorder %s33, 0
      %p194 = por %p192, %p193
      %p195 = scmp.ne.s32.totalorder %s183, %s184
      %p196 = scmp.eq.s32.totalorder %s34, 1
      %p197 = por %p195, %p196
      %p199 = scmp.ne.s32.totalorder %s184, %s198
      %p200 = scmp.eq.s32.totalorder %s34, 0
      %p201 = por %p199, %p200
      %s203 = sadd.s32 %s202, 1
      %p206 = scmp.eq.s32.totalorder %s28, 1
      %p207 = scmp.ne.s32.totalorder %s202, %s204
      %p208 = scmp.eq.s32.totalorder %s28, 0
      %p209 = por %p207, %p208
      %p210 = scmp.ne.s32.totalorder %s202, %s204
      %p211 = scmp.eq.s32.totalorder %s33, 1
      %p212 = por %p210, %p211
      %p213 = scmp.ne.s32.totalorder %s204, %s205
      %p214 = scmp.eq.s32.totalorder %s33, 0
      %p215 = por %p213, %p214
      %p216 = scmp.ne.s32.totalorder %s204, %s205
      %p217 = scmp.eq.s32.totalorder %s34, 1
      %p218 = por %p216, %p217
      %p220 = scmp.ne.s32.totalorder %s205, %s219
      %p221 = scmp.eq.s32.totalorder %s34, 0
      %p222 = por %p220, %p221
      %s224 = sadd.s32 %s223, 1
      %p227 = scmp.eq.s32.totalorder %s28, 1
      %p228 = scmp.ne.s32.totalorder %s223, %s225
      %p229 = scmp.eq.s32.totalorder %s28, 0
      %p230 = por %p228, %p229
      %p231 = scmp.ne.s32.totalorder %s223, %s225
      %p232 = scmp.eq.s32.totalorder %s33, 1
      %p233 = por %p231, %p232
      %p234 = scmp.ne.s32.totalorder %s225, %s226
      %p235 = scmp.eq.s32.totalorder %s33, 0
      %p236 = por %p234, %p235
      %p237 = scmp.ne.s32.totalorder %s225, %s226
      %p238 = scmp.eq.s32.totalorder %s34, 1
      %p239 = por %p237, %p238
      %p241 = scmp.ne.s32.totalorder %s226, %s240
      %p242 = scmp.eq.s32.totalorder %s34, 0
      %p243 = por %p241, %p242
      %s244 = ssub.s32 %s35, %s47
      %s245 = ssub.s32 %s36, %s43
      %s246 = sor.u32 %s244, %s245
      %p247 = scmp.eq.s32.totalorder %s246, 0
      %s249 = sadd.s32 %s248, 1
      %s250 = scalar_select %p247, %s248, %s249
      %p253 = pneg %p247
      %p254 = scmp.eq.s32.totalorder %s28, 1
      %p255 = por %p253, %p254
      %p256 = scmp.ne.s32.totalorder %s248, %s251
      %p257 = scmp.eq.s32.totalorder %s28, 0
      %p258 = por %p256, %p257
      %p259 = scmp.ne.s32.totalorder %s248, %s251
      %p260 = scmp.eq.s32.totalorder %s33, 1
      %p261 = por %p259, %p260
      %p262 = scmp.ne.s32.totalorder %s251, %s252
      %p263 = scmp.eq.s32.totalorder %s33, 0
      %p264 = por %p262, %p263
      %p265 = scmp.ne.s32.totalorder %s251, %s252
      %p266 = scmp.eq.s32.totalorder %s34, 1
      %p267 = por %p265, %p266
      %p269 = scmp.ne.s32.totalorder %s252, %s268
      %p270 = scmp.eq.s32.totalorder %s34, 0
      %p271 = por %p269, %p270
      %s272 = ssub.s32 %s35, %s47
      %s273 = ssub.s32 %s36, %s43
      %s274 = sor.u32 %s272, %s273
      %p275 = scmp.eq.s32.totalorder %s274, 0
      %s277 = sadd.s32 %s276, 1
      %s278 = scalar_select %p275, %s276, %s277
      %p281 = pneg %p275
      %p282 = scmp.eq.s32.totalorder %s28, 1
      %p283 = por %p281, %p282
      %p284 = scmp.ne.s32.totalorder %s276, %s279
      %p285 = scmp.eq.s32.totalorder %s28, 0
      %p286 = por %p284, %p285
      %p287 = scmp.ne.s32.totalorder %s276, %s279
      %p288 = scmp.eq.s32.totalorder %s33, 1
      %p289 = por %p287, %p288
      %p290 = scmp.ne.s32.totalorder %s279, %s280
      %p291 = scmp.eq.s32.totalorder %s33, 0
      %p292 = por %p290, %p291
      %p293 = scmp.ne.s32.totalorder %s279, %s280
      %p294 = scmp.eq.s32.totalorder %s34, 1
      %p295 = por %p293, %p294
      %p297 = scmp.ne.s32.totalorder %s280, %s296
      %p298 = scmp.eq.s32.totalorder %s34, 0
      %p299 = por %p297, %p298
      %s300 = ssub.s32 %s35, %s47
      %s301 = ssub.s32 %s36, %s43
      %s302 = sor.u32 %s300, %s301
      %p303 = scmp.eq.s32.totalorder %s302, 0
      %s305 = sadd.s32 %s304, 1
      %s306 = scalar_select %p303, %s304, %s305
      %p309 = pneg %p303
      %p310 = scmp.eq.s32.totalorder %s28, 1
      %p311 = por %p309, %p310
      %p312 = scmp.ne.s32.totalorder %s304, %s307
      %p313 = scmp.eq.s32.totalorder %s28, 0
      %p314 = por %p312, %p313
      %p315 = scmp.ne.s32.totalorder %s304, %s307
      %p316 = scmp.eq.s32.totalorder %s33, 1
      %p317 = por %p315, %p316
      %p318 = scmp.ne.s32.totalorder %s307, %s308
      %p319 = scmp.eq.s32.totalorder %s33, 0
      %p320 = por %p318, %p319
      %p321 = scmp.ne.s32.totalorder %s307, %s308
      %p322 = scmp.eq.s32.totalorder %s34, 1
      %p323 = por %p321, %p322
      %p325 = scmp.ne.s32.totalorder %s308, %s324
      %p326 = scmp.eq.s32.totalorder %s34, 0
      %p327 = por %p325, %p326
      %p328 = scmp.le.s32.totalorder 1, %s28
      %p329 = scmp.lt.s32.totalorder %s28, 3
      %p330 = pnand %p328, %p329
      %p331 = pneg %p330
      // Predicated region
      $region9: #{tpu_custom_call.1} parent=5 // pred_check
        _
      $region10: #{tpu_custom_call.1} parent=5 // pred_check_branch
        %333 = sbr.rel (%p330) target = $region12
      $region11: #{tpu_custom_call.1} parent=5 // pred_region
        %s334 = ssub.s32 %s28, 1
        // Predicated region
        $region13: #{tpu_custom_call.1} parent=11 // pred_check
          %p335 = pneg %p89
        $region14: #{tpu_custom_call.1} parent=11 // pred_check_branch
          %337 = sbr.rel (%p335) target = $region16
        $region15: #{tpu_custom_call.1} parent=11 // pred_region
          _
        $region16: #{tpu_custom_call.1} parent=11 // pred_fallthru
          _
        // Predicated region
        $region17: #{tpu_custom_call.1} parent=11 // pred_check
          %p338 = pneg %p110
        $region18: #{tpu_custom_call.1} parent=11 // pred_check_branch
          %340 = sbr.rel (%p338) target = $region20
        $region19: #{tpu_custom_call.1} parent=11 // pred_region
          _
        $region20: #{tpu_custom_call.1} parent=11 // pred_fallthru
          _
        // Predicated region
        $region21: #{tpu_custom_call.1} parent=11 // pred_check
          %p341 = pneg %p131
        $region22: #{tpu_custom_call.1} parent=11 // pred_check_branch
          %343 = sbr.rel (%p341) target = $region24
        $region23: #{tpu_custom_call.1} parent=11 // pred_region
          %s345 = ssub.s32 256, 256
          %346 = vsyncadd [#allocation6], %s345
          %s347 = sshll.u32 [#allocation5], 4
          %s348 = int_to_ptr.vmem [resolvable:$true] %s347
          %353 = dma.hbm_to_vmem [thread:$0]  %s3, 256, %s348, [#allocation6], 64, 64, 4
        $region24: #{tpu_custom_call.1} parent=11 // pred_fallthru
          _
        // Predicated region
        $region25: #{tpu_custom_call.1} parent=11 // pred_check
          %p354 = pneg %p152
        $region26: #{tpu_custom_call.1} parent=11 // pred_check_branch
          %356 = sbr.rel (%p354) target = $region28
        $region27: #{tpu_custom_call.1} parent=11 // pred_region
          %s358 = ssub.s32 256, 256
          %359 = vsyncadd [#allocation6], %s358
          %s360 = sshll.u32 [#allocation7], 4
          %s361 = int_to_ptr.vmem [resolvable:$true] %s360
          %366 = dma.hbm_to_vmem [thread:$0]  %s4, 256, %s361, [#allocation6], 64, 64, 4
        $region28: #{tpu_custom_call.1} parent=11 // pred_fallthru
          _
        // Predicated region
        $region29: #{tpu_custom_call.1} parent=11 // pred_check
          %p367 = pneg %p173
        $region30: #{tpu_custom_call.1} parent=11 // pred_check_branch
          %369 = sbr.rel (%p367) target = $region32
        $region31: #{tpu_custom_call.1} parent=11 // pred_region
          _
        $region32: #{tpu_custom_call.1} parent=11 // pred_fallthru
          _
        // Predicated region
        $region33: #{tpu_custom_call.1} parent=11 // pred_check
          %p370 = pneg %p194
        $region34: #{tpu_custom_call.1} parent=11 // pred_check_branch
          %372 = sbr.rel (%p370) target = $region36
        $region35: #{tpu_custom_call.1} parent=11 // pred_region
          _
        $region36: #{tpu_custom_call.1} parent=11 // pred_fallthru
          _
        // Predicated region
        $region37: #{tpu_custom_call.1} parent=11 // pred_check
          %p373 = pneg %p215
        $region38: #{tpu_custom_call.1} parent=11 // pred_check_branch
          %375 = sbr.rel (%p373) target = $region40
        $region39: #{tpu_custom_call.1} parent=11 // pred_region
          _
        $region40: #{tpu_custom_call.1} parent=11 // pred_fallthru
          _
        // Predicated region
        $region41: #{tpu_custom_call.1} parent=11 // pred_check
          %p376 = pneg %p236
        $region42: #{tpu_custom_call.1} parent=11 // pred_check_branch
          %378 = sbr.rel (%p376) target = $region44
        $region43: #{tpu_custom_call.1} parent=11 // pred_region
          _
        $region44: #{tpu_custom_call.1} parent=11 // pred_fallthru
          _
      $region12: #{tpu_custom_call.1} parent=5 // pred_fallthru
        _
      %p379 = scmp.lt.s32.totalorder %s28, 2
      // Predicated region
      $region45: #{tpu_custom_call.1} parent=5 // pred_check
        %p380 = pneg %p379
      $region46: #{tpu_custom_call.1} parent=5 // pred_check_branch
        %382 = sbr.rel (%p380) target = $region48
      $region47: #{tpu_custom_call.1} parent=5 // pred_region
        // Predicated region
        $region49: #{tpu_custom_call.1} parent=47 // pred_check
          %p383 = pneg %p62
        $region50: #{tpu_custom_call.1} parent=47 // pred_check_branch
          %385 = sbr.rel (%p383) target = $region52
        $region51: #{tpu_custom_call.1} parent=47 // pred_region
          %s386 = sand.u32 %s52, 1
          %s387 = scalar_lea.sflag [#allocation3], %s386
          %s388 = sand.u32 %s52, 1
          %s389 = smul.addr %s388, 8
          %s390 = scalar_lea.vmem [#allocation2], %s389
          %s392 = ssub.s32 128, 128
          %393 = vsyncadd %s387, %s392
          %s394 = sadd.s32 %s36, %s35
          %s395 = smul.addr %s394, 128
          %s396 = scalar_lea.hbm %s0, %s395
          %s398 = sshll.u32 %s390, 4
          %s399 = int_to_ptr.vmem [resolvable:$true] %s398
          %401 = dma.hbm_to_vmem [thread:$0]  %s396, 128, %s399, %s387
        $region52: #{tpu_custom_call.1} parent=47 // pred_fallthru
          _
      $region48: #{tpu_custom_call.1} parent=5 // pred_fallthru
        _
      %p402 = scmp.le.s32.totalorder 1, %s28
      %p403 = scmp.lt.s32.totalorder %s28, 3
      %p404 = pnand %p402, %p403
      %p405 = pneg %p404
      // Predicated region
      $region53: #{tpu_custom_call.1} parent=5 // pred_check
        _
      $region54: #{tpu_custom_call.1} parent=5 // pred_check_branch
        %407 = sbr.rel (%p404) target = $region56
      $region55: #{tpu_custom_call.1} parent=5 // pred_region
        %s408 = ssub.s32 %s28, 1
        %s409 = sand.u32 %s55, 1
        %s410 = scalar_lea.sflag [#allocation3], %s409
        %s411 = sand.u32 %s55, 1
        %s412 = smul.addr %s411, 8
        %s413 = scalar_lea.vmem [#allocation2], %s412
        // Predicated region
        $region57: #{tpu_custom_call.1} parent=55 // pred_check
          %p414 = pneg %p68
        $region58: #{tpu_custom_call.1} parent=55 // pred_check_branch
          %416 = sbr.rel (%p414) target = $region60
        $region59: #{tpu_custom_call.1} parent=55 // pred_region
          %417 = dma.done %s410, 128
        $region60: #{tpu_custom_call.1} parent=55 // pred_fallthru
          _
        // Predicated region
        $region61: #{tpu_custom_call.1} parent=55 // pred_check
          %p418 = pneg %p131
        $region62: #{tpu_custom_call.1} parent=55 // pred_check_branch
          %420 = sbr.rel (%p418) target = $region64
        $region63: #{tpu_custom_call.1} parent=55 // pred_region
          %421 = dma.done [#allocation6], 256
        $region64: #{tpu_custom_call.1} parent=55 // pred_fallthru
          _
        // Predicated region
        $region65: #{tpu_custom_call.1} parent=55 // pred_check
          %p422 = pneg %p152
        $region66: #{tpu_custom_call.1} parent=55 // pred_check_branch
          %424 = sbr.rel (%p422) target = $region68
        $region67: #{tpu_custom_call.1} parent=55 // pred_region
          %425 = dma.done [#allocation6], 256
        $region68: #{tpu_custom_call.1} parent=55 // pred_fallthru
          _
        %s426 = sand.u32 %s55, 1
        %s427 = scalar_lea.sflag [#allocation3], %s426
        %s428 = sand.u32 %s55, 1
        %s429 = smul.addr %s428, 8
        %s430 = scalar_lea.vmem [#allocation2], %s429
        %p431 = pneg %p68
        %p432 = pneg %p65
        %p433 = pneg %p89
        %p434 = pneg %p86
        %p435 = pneg %p110
        %p436 = pneg %p107
        %p437 = pneg %p131
        %p438 = pneg %p128
        %p439 = pneg %p152
        %p440 = pneg %p149
        %p441 = pneg %p173
        %p442 = pneg %p170
        %p443 = pneg %p194
        %p444 = pneg %p191
        %p445 = pneg %p215
        %p446 = pneg %p212
        %p447 = pneg %p236
        %p448 = pneg %p233
        %p449 = pneg %p264
        %p450 = pneg %p261
        %s451 = sand.u32 %s251, 1
        %s452 = scalar_lea.sflag [#allocation4], %s451
        %s453 = sand.u32 %s251, 1
        %s454 = smul.addr %s453, 16
        %s455 = scalar_lea.vmem [#allocation8], %s454
        %p456 = pneg %p292
        %p457 = pneg %p289
        %s458 = sand.u32 %s33, 1
        %s459 = scalar_lea.sflag [#allocation10], %s458
        %s460 = sand.u32 %s279, 1
        %s461 = smul.addr %s460, 16
        %s462 = scalar_lea.vmem [#allocation9], %s461
        %p463 = pneg %p320
        %p464 = pneg %p317
        %s465 = sand.u32 %s33, 1
        %s466 = scalar_lea.sflag [#allocation10], %s465
        %s467 = sand.u32 %s307, 1
        %s468 = smul.addr %s467, 16
        %s469 = scalar_lea.vmem [#allocation11], %s468
        %v471 = vld [vmem:[%s413] sm:$0xff]
        %v472 = vld [vmem:[%s1] sm:$0x1]
        %v473 = vld [vmem:[%s2] sm:$0x1]
        %vm474 = vcmask 261120
        %v475 = vsel %vm474, %v471, 0.0
        %476 = vadd.xlane.f32.xlu0 %v475
        %v477 = vpop.xlane.xlu0 %476
        %v478 = vrcp.pop 32.0
        %v479 = vmul.f32 %v477, %v478
        %v480 = vsub.f32 %v471, %v479
        %v481 = vmul.f32 %v480, %v480
        %v482 = vsel %vm474, %v481, 0.0
        %483 = vadd.xlane.f32.xlu0 %v482
        %v484 = vpop.xlane.xlu0 %483
        %v485 = vmul.f32 %v484, %v478
        %v486 = vadd.f32 %v485, 1e-05
        %v487 = vrsqrt.pop %v486
        %v488 = vmul.f32 %v480, %v487
        %v490 = vlaneseq
        %v491 = vshrl.u32 %v490, 7
        %v492 = vsub.s32 0, %v491
        %v493 = vrot.slane %v472, %v492
        %v495 = vmul.f32 %v488, %v493
        %v497 = vlaneseq
        %v498 = vshrl.u32 %v497, 7
        %v499 = vsub.s32 0, %v498
        %v500 = vrot.slane %v473, %v499
        %v502 = vadd.f32 %v495, %v500
        %v503 = vpack.c.bf16 %v502, %v502
        %v504 = vld [vmem:[#allocation5] sm:$0xf]
        %v505 = vld [vmem:[#allocation5 + $0x4] sm:$0xf]
        %v506 = vld [vmem:[#allocation5 + $0x8] sm:$0xf]
        %v507 = vld [vmem:[#allocation5 + $0xc] sm:$0xf]
        %v508 = vld [vmem:[%s6] sm:$0x1]
        %v510 = vlaneseq
        %v511 = vshrl.u32 %v510, 7
        %v512 = vsub.s32 0, %v511
        %v513 = vrot.slane %v508, %v512
        %v519 = vunpack.c.l.b16 %v504
        %v520 = vunpack.c.l.b16 %v505
        %v521 = vunpack.c.l.b16 %v506
        %v522 = vunpack.c.l.b16 %v507
        %v523 = vpack.c.b16 %v520, %v519
        %v524 = vpack.c.b16 %v522, %v521
        %v528 = vsel %vm474, %v503, 0
        %530 = vmatprep.subr.bf16.mxu0 0
        %531 = vmatpush1.bf16.msra.mxu0 %v523
        %532 = vmatprep.subr.bf16.mxu0 0
        %533 = vmatpush1.bf16.msra.mxu0 %v524
        %534 = vmatprep.subr.bf16.mxu0 0
        %535 = vmatpush1.bf16.msra.mxu0 0
        %536 = vmatprep.subr.bf16.mxu0 0
        %537 = vmatpush1.bf16.msra.mxu0 0
        %538 = vmatprep.subr.bf16.mxu0 0
        %539 = vmatpush1.bf16.msra.mxu0 0
        %540 = vmatprep.subr.bf16.mxu0 0
        %541 = vmatpush1.bf16.msra.mxu0 0
        %542 = vmatprep.subr.bf16.mxu0 0
        %543 = vmatpush1.bf16.msra.mxu0 0
        %544 = vmatprep.subr.bf16.mxu0 0
        %545 = vmatpush1.bf16.msra.mxu0 0
        %546 = vmatprep.subr.bf16.mxu0 0
        %547 = vmatpush1.bf16.msra.mxu0 0
        %548 = vmatprep.subr.bf16.mxu0 0
        %549 = vmatpush1.bf16.msra.mxu0 0
        %550 = vmatprep.subr.bf16.mxu0 0
        %551 = vmatpush1.bf16.msra.mxu0 0
        %552 = vmatprep.subr.bf16.mxu0 0
        %553 = vmatpush1.bf16.msra.mxu0 0
        %554 = vmatprep.subr.bf16.mxu0 0
        %555 = vmatpush1.bf16.msra.mxu0 0
        %556 = vmatprep.subr.bf16.mxu0 0
        %557 = vmatpush1.bf16.msra.mxu0 0
        %558 = vmatprep.subr.bf16.mxu0 0
        %559 = vmatpush1.bf16.msra.mxu0 0
        %560 = vmatprep.subr.bf16.mxu0 0
        %561 = vmatpush1.bf16.msra.mxu0 0
        %562 = vmatprep.mubr.bf16.mxu0 0
        %563 = vmatmul.mubr.bf16.gmra.mrb[0].mxu0 %v528
        %v564 = vpop.f32.mrb[0].mxu0
        %v565 = vadd.f32 %v513, %v564
        %v566 = vpop.f32.mrb[0].mxu0
        %v567 = vpop.f32.mrb[0].mxu0
        %v568 = vpop.f32.mrb[0].mxu0
        %569 = vdwg.mxu0
        %v570 = vld [vmem:[#allocation7] sm:$0xf]
        %v571 = vld [vmem:[#allocation7 + $0x4] sm:$0xf]
        %v572 = vld [vmem:[#allocation7 + $0x8] sm:$0xf]
        %v573 = vld [vmem:[#allocation7 + $0xc] sm:$0xf]
        %v574 = vld [vmem:[%s7] sm:$0x1]
        %v576 = vlaneseq
        %v577 = vshrl.u32 %v576, 7
        %v578 = vsub.s32 0, %v577
        %v579 = vrot.slane %v574, %v578
        %v585 = vunpack.c.l.b16 %v570
        %v586 = vunpack.c.l.b16 %v571
        %v587 = vunpack.c.l.b16 %v572
        %v588 = vunpack.c.l.b16 %v573
        %v589 = vpack.c.b16 %v586, %v585
        %v590 = vpack.c.b16 %v588, %v587
        %593 = vmatprep.subr.bf16.mxu0 0
        %594 = vmatpush1.bf16.msra.mxu0 %v589
        %595 = vmatprep.subr.bf16.mxu0 0
        %596 = vmatpush1.bf16.msra.mxu0 %v590
        %597 = vmatprep.subr.bf16.mxu0 0
        %598 = vmatpush1.bf16.msra.mxu0 0
        %599 = vmatprep.subr.bf16.mxu0 0
        %600 = vmatpush1.bf16.msra.mxu0 0
        %601 = vmatprep.subr.bf16.mxu0 0
        %602 = vmatpush1.bf16.msra.mxu0 0
        %603 = vmatprep.subr.bf16.mxu0 0
        %604 = vmatpush1.bf16.msra.mxu0 0
        %605 = vmatprep.subr.bf16.mxu0 0
        %606 = vmatpush1.bf16.msra.mxu0 0
        %607 = vmatprep.subr.bf16.mxu0 0
        %608 = vmatpush1.bf16.msra.mxu0 0
        %609 = vmatprep.subr.bf16.mxu0 0
        %610 = vmatpush1.bf16.msra.mxu0 0
        %611 = vmatprep.subr.bf16.mxu0 0
        %612 = vmatpush1.bf16.msra.mxu0 0
        %613 = vmatprep.subr.bf16.mxu0 0
        %614 = vmatpush1.bf16.msra.mxu0 0
        %615 = vmatprep.subr.bf16.mxu0 0
        %616 = vmatpush1.bf16.msra.mxu0 0
        %617 = vmatprep.subr.bf16.mxu0 0
        %618 = vmatpush1.bf16.msra.mxu0 0
        %619 = vmatprep.subr.bf16.mxu0 0
        %620 = vmatpush1.bf16.msra.mxu0 0
        %621 = vmatprep.subr.bf16.mxu0 0
        %622 = vmatpush1.bf16.msra.mxu0 0
        %623 = vmatprep.subr.bf16.mxu0 0
        %624 = vmatpush1.bf16.msra.mxu0 0
        %625 = vmatprep.mubr.bf16.mxu0 0
        %626 = vmatmul.mubr.bf16.gmra.mrb[0].mxu0 %v528
        %v627 = vpop.f32.mrb[0].mxu0
        %v628 = vadd.f32 %v579, %v627
        %v629 = vpop.f32.mrb[0].mxu0
        %v630 = vpop.f32.mrb[0].mxu0
        %v631 = vpop.f32.mrb[0].mxu0
        %632 = vdwg.mxu0
        %v633 = vld [vmem:[%s5] sm:$0xf]
        %v634 = vld [vmem:[%s5 + $0x4] sm:$0xf]
        %v635 = vld [vmem:[%s5 + $0x8] sm:$0xf]
        %v636 = vld [vmem:[%s5 + $0xc] sm:$0xf]
        %v637 = vld [vmem:[%s8] sm:$0x1]
        %v639 = vlaneseq
        %v640 = vshrl.u32 %v639, 7
        %v641 = vsub.s32 0, %v640
        %v642 = vrot.slane %v637, %v641
        %v648 = vunpack.c.l.b16 %v633
        %v649 = vunpack.c.l.b16 %v634
        %v650 = vunpack.c.l.b16 %v635
        %v651 = vunpack.c.l.b16 %v636
        %v652 = vpack.c.b16 %v649, %v648
        %v653 = vpack.c.b16 %v651, %v650
        %656 = vmatprep.subr.bf16.mxu0 0
        %657 = vmatpush1.bf16.msra.mxu0 %v652
        %658 = vmatprep.subr.bf16.mxu0 0
        %659 = vmatpush1.bf16.msra.mxu0 %v653
        %660 = vmatprep.subr.bf16.mxu0 0
        %661 = vmatpush1.bf16.msra.mxu0 0
        %662 = vmatprep.subr.bf16.mxu0 0
        %663 = vmatpush1.bf16.msra.mxu0 0
        %664 = vmatprep.subr.bf16.mxu0 0
        %665 = vmatpush1.bf16.msra.mxu0 0
        %666 = vmatprep.subr.bf16.mxu0 0
        %667 = vmatpush1.bf16.msra.mxu0 0
        %668 = vmatprep.subr.bf16.mxu0 0
        %669 = vmatpush1.bf16.msra.mxu0 0
        %670 = vmatprep.subr.bf16.mxu0 0
        %671 = vmatpush1.bf16.msra.mxu0 0
        %672 = vmatprep.subr.bf16.mxu0 0
        %673 = vmatpush1.bf16.msra.mxu0 0
        %674 = vmatprep.subr.bf16.mxu0 0
        %675 = vmatpush1.bf16.msra.mxu0 0
        %676 = vmatprep.subr.bf16.mxu0 0
        %677 = vmatpush1.bf16.msra.mxu0 0
        %678 = vmatprep.subr.bf16.mxu0 0
        %679 = vmatpush1.bf16.msra.mxu0 0
        %680 = vmatprep.subr.bf16.mxu0 0
        %681 = vmatpush1.bf16.msra.mxu0 0
        %682 = vmatprep.subr.bf16.mxu0 0
        %683 = vmatpush1.bf16.msra.mxu0 0
        %684 = vmatprep.subr.bf16.mxu0 0
        %685 = vmatpush1.bf16.msra.mxu0 0
        %686 = vmatprep.subr.bf16.mxu0 0
        %687 = vmatpush1.bf16.msra.mxu0 0
        %688 = vmatprep.mubr.bf16.mxu0 0
        %689 = vmatmul.mubr.bf16.gmra.mrb[0].mxu0 %v528
        %v690 = vpop.f32.mrb[0].mxu0
        %v691 = vadd.f32 %v642, %v690
        %v692 = vpop.f32.mrb[0].mxu0
        %v693 = vpop.f32.mrb[0].mxu0
        %v694 = vpop.f32.mrb[0].mxu0
        %695 = vdwg.mxu0
        %v696 = vmul.f32 %v565, 0.35355338
        %698 = vrot.lane.b32.xlu0 %v696, 120
        %v699 = vpop.permute.xlu0 %698
        %701 = vrot.lane.b32.xlu0 %v696, 112
        %v702 = vpop.permute.xlu0 %701
        %704 = vrot.lane.b32.xlu0 %v696, 104
        %v705 = vpop.permute.xlu0 %704
        %v707 = vcombine.low %v696, %v702
        %v708 = vcombine.high %v696, %v702
        %v710 = vunpack.c.l.s4 1983009808
        %v711 = vunpack.c.0.s8 %v710
        %v712 = vlaneseq
        %v713 = vshrl.u32 %v712, 7
        %v714 = vsub.s32 %v711, %v713
        %v715 = vrot.slane %v707, %v714
        %v717 = vunpack.c.l.s4 1983009808
        %v718 = vunpack.c.0.s8 %v717
        %v719 = vlaneseq
        %v720 = vshrl.u32 %v719, 7
        %v721 = vsub.s32 %v718, %v720
        %v722 = vrot.slane %v708, %v721
        %v723 = vcombine.low %v699, %v705
        %v724 = vcombine.high %v699, %v705
        %v726 = vunpack.c.l.s4 1983009808
        %v727 = vunpack.c.0.s8 %v726
        %v728 = vlaneseq
        %v729 = vshrl.u32 %v728, 7
        %v730 = vsub.s32 %v727, %v729
        %v731 = vrot.slane %v723, %v730
        %v733 = vunpack.c.l.s4 1983009808
        %v734 = vunpack.c.0.s8 %v733
        %v735 = vlaneseq
        %v736 = vshrl.u32 %v735, 7
        %v737 = vsub.s32 %v734, %v736
        %v738 = vrot.slane %v724, %v737
        %v739 = vcombine.low %v715, %v731
        %v740 = vcombine.high %v715, %v731
        %v742 = vunpack.c.l.s4 1934713408
        %v743 = vunpack.c.0.s8 %v742
        %v744 = vlaneseq
        %v745 = vshrl.u32 %v744, 7
        %v746 = vsub.s32 %v743, %v745
        %v747 = vrot.slane %v739, %v746
        %v749 = vunpack.c.l.s4 1934713408
        %v750 = vunpack.c.0.s8 %v749
        %v751 = vlaneseq
        %v752 = vshrl.u32 %v751, 7
        %v753 = vsub.s32 %v750, %v752
        %v754 = vrot.slane %v740, %v753
        %v755 = vcombine.low %v722, %v738
        %v756 = vcombine.high %v722, %v738
        %v758 = vunpack.c.l.s4 1934713408
        %v759 = vunpack.c.0.s8 %v758
        %v760 = vlaneseq
        %v761 = vshrl.u32 %v760, 7
        %v762 = vsub.s32 %v759, %v761
        %v763 = vrot.slane %v755, %v762
        %v765 = vunpack.c.l.s4 1934713408
        %v766 = vunpack.c.0.s8 %v765
        %v767 = vlaneseq
        %v768 = vshrl.u32 %v767, 7
        %v769 = vsub.s32 %v766, %v768
        %v770 = vrot.slane %v756, %v769
        %v771 = vcombine.high %v747, 0.0
        %v772 = vcombine.high %v754, 0.0
        %v773 = vcombine.high %v763, 0.0
        %v774 = vcombine.high %v770, 0.0
        %v775 = vcombine.low %v747, %v754
        %v777 = vunpack.c.l.s4 1983009808
        %v778 = vunpack.c.0.s8 %v777
        %v779 = vlaneseq
        %v780 = vshrl.u32 %v779, 7
        %v781 = vsub.s32 %v778, %v780
        %v782 = vrot.slane %v775, %v781
        %v783 = vcombine.low %v771, %v772
        %v785 = vunpack.c.l.s4 1983009808
        %v786 = vunpack.c.0.s8 %v785
        %v787 = vlaneseq
        %v788 = vshrl.u32 %v787, 7
        %v789 = vsub.s32 %v786, %v788
        %v790 = vrot.slane %v783, %v789
        %v791 = vcombine.low %v763, %v770
        %v793 = vunpack.c.l.s4 1983009808
        %v794 = vunpack.c.0.s8 %v793
        %v795 = vlaneseq
        %v796 = vshrl.u32 %v795, 7
        %v797 = vsub.s32 %v794, %v796
        %v798 = vrot.slane %v791, %v797
        %v799 = vcombine.low %v773, %v774
        %v801 = vunpack.c.l.s4 1983009808
        %v802 = vunpack.c.0.s8 %v801
        %v803 = vlaneseq
        %v804 = vshrl.u32 %v803, 7
        %v805 = vsub.s32 %v802, %v804
        %v806 = vrot.slane %v799, %v805
        %v807 = vcombine.low %v782, %v790
        %v808 = vcombine.high %v782, %v790
        %v810 = vunpack.c.l.s4 1934713408
        %v811 = vunpack.c.0.s8 %v810
        %v812 = vlaneseq
        %v813 = vshrl.u32 %v812, 7
        %v814 = vsub.s32 %v811, %v813
        %v815 = vrot.slane %v807, %v814
        %v817 = vunpack.c.l.s4 1934713408
        %v818 = vunpack.c.0.s8 %v817
        %v819 = vlaneseq
        %v820 = vshrl.u32 %v819, 7
        %v821 = vsub.s32 %v818, %v820
        %v822 = vrot.slane %v808, %v821
        %v823 = vcombine.low %v798, %v806
        %v824 = vcombine.high %v798, %v806
        %v826 = vunpack.c.l.s4 1934713408
        %v827 = vunpack.c.0.s8 %v826
        %v828 = vlaneseq
        %v829 = vshrl.u32 %v828, 7
        %v830 = vsub.s32 %v827, %v829
        %v831 = vrot.slane %v823, %v830
        %v833 = vunpack.c.l.s4 1934713408
        %v834 = vunpack.c.0.s8 %v833
        %v835 = vlaneseq
        %v836 = vshrl.u32 %v835, 7
        %v837 = vsub.s32 %v834, %v836
        %v838 = vrot.slane %v824, %v837
        %v839 = vcombine.low %v815, %v831
        %v840 = vcombine.high %v815, %v831
        %v841 = vcombine.low %v822, %v838
        %v842 = vcombine.high %v822, %v838
        %v843 = vpack.c.bf16 %v839, %v839
        %v844 = vpack.c.bf16 %v840, %v840
        %v845 = vpack.c.bf16 %v841, %v841
        %v846 = vpack.c.bf16 %v842, %v842
        %vm847 = vcmask 60416
        %848 = vst.msk [vmem:[%s455] sm:$0xf] %vm847, %v843
        %849 = vst.msk [vmem:[%s455 + $0x4] sm:$0xf] %vm847, %v844
        %850 = vst.msk [vmem:[%s455 + $0x8] sm:$0xf] %vm847, %v845
        %851 = vst.msk [vmem:[%s455 + $0xc] sm:$0xf] %vm847, %v846
        %853 = vrot.lane.b32.xlu0 %v628, 120
        %v854 = vpop.permute.xlu0 %853
        %856 = vrot.lane.b32.xlu0 %v628, 112
        %v857 = vpop.permute.xlu0 %856
        %859 = vrot.lane.b32.xlu0 %v628, 104
        %v860 = vpop.permute.xlu0 %859
        %v862 = vcombine.low %v628, %v857
        %v863 = vcombine.high %v628, %v857
        %v865 = vunpack.c.l.s4 1983009808
        %v866 = vunpack.c.0.s8 %v865
        %v867 = vlaneseq
        %v868 = vshrl.u32 %v867, 7
        %v869 = vsub.s32 %v866, %v868
        %v870 = vrot.slane %v862, %v869
        %v872 = vunpack.c.l.s4 1983009808
        %v873 = vunpack.c.0.s8 %v872
        %v874 = vlaneseq
        %v875 = vshrl.u32 %v874, 7
        %v876 = vsub.s32 %v873, %v875
        %v877 = vrot.slane %v863, %v876
        %v878 = vcombine.low %v854, %v860
        %v879 = vcombine.high %v854, %v860
        %v881 = vunpack.c.l.s4 1983009808
        %v882 = vunpack.c.0.s8 %v881
        %v883 = vlaneseq
        %v884 = vshrl.u32 %v883, 7
        %v885 = vsub.s32 %v882, %v884
        %v886 = vrot.slane %v878, %v885
        %v888 = vunpack.c.l.s4 1983009808
        %v889 = vunpack.c.0.s8 %v888
        %v890 = vlaneseq
        %v891 = vshrl.u32 %v890, 7
        %v892 = vsub.s32 %v889, %v891
        %v893 = vrot.slane %v879, %v892
        %v894 = vcombine.low %v870, %v886
        %v895 = vcombine.high %v870, %v886
        %v897 = vunpack.c.l.s4 1934713408
        %v898 = vunpack.c.0.s8 %v897
        %v899 = vlaneseq
        %v900 = vshrl.u32 %v899, 7
        %v901 = vsub.s32 %v898, %v900
        %v902 = vrot.slane %v894, %v901
        %v904 = vunpack.c.l.s4 1934713408
        %v905 = vunpack.c.0.s8 %v904
        %v906 = vlaneseq
        %v907 = vshrl.u32 %v906, 7
        %v908 = vsub.s32 %v905, %v907
        %v909 = vrot.slane %v895, %v908
        %v910 = vcombine.low %v877, %v893
        %v911 = vcombine.high %v877, %v893
        %v913 = vunpack.c.l.s4 1934713408
        %v914 = vunpack.c.0.s8 %v913
        %v915 = vlaneseq
        %v916 = vshrl.u32 %v915, 7
        %v917 = vsub.s32 %v914, %v916
        %v918 = vrot.slane %v910, %v917
        %v920 = vunpack.c.l.s4 1934713408
        %v921 = vunpack.c.0.s8 %v920
        %v922 = vlaneseq
        %v923 = vshrl.u32 %v922, 7
        %v924 = vsub.s32 %v921, %v923
        %v925 = vrot.slane %v911, %v924
        %v926 = vcombine.high %v902, 0.0
        %v927 = vcombine.high %v909, 0.0
        %v928 = vcombine.high %v918, 0.0
        %v929 = vcombine.high %v925, 0.0
        %v930 = vcombine.low %v902, %v909
        %v932 = vunpack.c.l.s4 1983009808
        %v933 = vunpack.c.0.s8 %v932
        %v934 = vlaneseq
        %v935 = vshrl.u32 %v934, 7
        %v936 = vsub.s32 %v933, %v935
        %v937 = vrot.slane %v930, %v936
        %v938 = vcombine.low %v926, %v927
        %v940 = vunpack.c.l.s4 1983009808
        %v941 = vunpack.c.0.s8 %v940
        %v942 = vlaneseq
        %v943 = vshrl.u32 %v942, 7
        %v944 = vsub.s32 %v941, %v943
        %v945 = vrot.slane %v938, %v944
        %v946 = vcombine.low %v918, %v925
        %v948 = vunpack.c.l.s4 1983009808
        %v949 = vunpack.c.0.s8 %v948
        %v950 = vlaneseq
        %v951 = vshrl.u32 %v950, 7
        %v952 = vsub.s32 %v949, %v951
        %v953 = vrot.slane %v946, %v952
        %v954 = vcombine.low %v928, %v929
        %v956 = vunpack.c.l.s4 1983009808
        %v957 = vunpack.c.0.s8 %v956
        %v958 = vlaneseq
        %v959 = vshrl.u32 %v958, 7
        %v960 = vsub.s32 %v957, %v959
        %v961 = vrot.slane %v954, %v960
        %v962 = vcombine.low %v937, %v945
        %v963 = vcombine.high %v937, %v945
        %v965 = vunpack.c.l.s4 1934713408
        %v966 = vunpack.c.0.s8 %v965
        %v967 = vlaneseq
        %v968 = vshrl.u32 %v967, 7
        %v969 = vsub.s32 %v966, %v968
        %v970 = vrot.slane %v962, %v969
        %v972 = vunpack.c.l.s4 1934713408
        %v973 = vunpack.c.0.s8 %v972
        %v974 = vlaneseq
        %v975 = vshrl.u32 %v974, 7
        %v976 = vsub.s32 %v973, %v975
        %v977 = vrot.slane %v963, %v976
        %v978 = vcombine.low %v953, %v961
        %v979 = vcombine.high %v953, %v961
        %v981 = vunpack.c.l.s4 1934713408
        %v982 = vunpack.c.0.s8 %v981
        %v983 = vlaneseq
        %v984 = vshrl.u32 %v983, 7
        %v985 = vsub.s32 %v982, %v984
        %v986 = vrot.slane %v978, %v985
        %v988 = vunpack.c.l.s4 1934713408
        %v989 = vunpack.c.0.s8 %v988
        %v990 = vlaneseq
        %v991 = vshrl.u32 %v990, 7
        %v992 = vsub.s32 %v989, %v991
        %v993 = vrot.slane %v979, %v992
        %v994 = vcombine.low %v970, %v986
        %v995 = vcombine.high %v970, %v986
        %v996 = vcombine.low %v977, %v993
        %v997 = vcombine.high %v977, %v993
        %v998 = vpack.c.bf16 %v994, %v994
        %v999 = vpack.c.bf16 %v995, %v995
        %v1000 = vpack.c.bf16 %v996, %v996
        %v1001 = vpack.c.bf16 %v997, %v997
        %1002 = vst.msk [vmem:[%s462] sm:$0xf] %vm847, %v998
        %1003 = vst.msk [vmem:[%s462 + $0x4] sm:$0xf] %vm847, %v999
        %1004 = vst.msk [vmem:[%s462 + $0x8] sm:$0xf] %vm847, %v1000
        %1005 = vst.msk [vmem:[%s462 + $0xc] sm:$0xf] %vm847, %v1001
        %1007 = vrot.lane.b32.xlu0 %v691, 120
        %v1008 = vpop.permute.xlu0 %1007
        %1010 = vrot.lane.b32.xlu0 %v691, 112
        %v1011 = vpop.permute.xlu0 %1010
        %1013 = vrot.lane.b32.xlu0 %v691, 104
        %v1014 = vpop.permute.xlu0 %1013
        %v1016 = vcombine.low %v691, %v1011
        %v1017 = vcombine.high %v691, %v1011
        %v1019 = vunpack.c.l.s4 1983009808
        %v1020 = vunpack.c.0.s8 %v1019
        %v1021 = vlaneseq
        %v1022 = vshrl.u32 %v1021, 7
        %v1023 = vsub.s32 %v1020, %v1022
        %v1024 = vrot.slane %v1016, %v1023
        %v1026 = vunpack.c.l.s4 1983009808
        %v1027 = vunpack.c.0.s8 %v1026
        %v1028 = vlaneseq
        %v1029 = vshrl.u32 %v1028, 7
        %v1030 = vsub.s32 %v1027, %v1029
        %v1031 = vrot.slane %v1017, %v1030
        %v1032 = vcombine.low %v1008, %v1014
        %v1033 = vcombine.high %v1008, %v1014
        %v1035 = vunpack.c.l.s4 1983009808
        %v1036 = vunpack.c.0.s8 %v1035
        %v1037 = vlaneseq
        %v1038 = vshrl.u32 %v1037, 7
        %v1039 = vsub.s32 %v1036, %v1038
        %v1040 = vrot.slane %v1032, %v1039
        %v1042 = vunpack.c.l.s4 1983009808
        %v1043 = vunpack.c.0.s8 %v1042
        %v1044 = vlaneseq
        %v1045 = vshrl.u32 %v1044, 7
        %v1046 = vsub.s32 %v1043, %v1045
        %v1047 = vrot.slane %v1033, %v1046
        %v1048 = vcombine.low %v1024, %v1040
        %v1049 = vcombine.high %v1024, %v1040
        %v1051 = vunpack.c.l.s4 1934713408
        %v1052 = vunpack.c.0.s8 %v1051
        %v1053 = vlaneseq
        %v1054 = vshrl.u32 %v1053, 7
        %v1055 = vsub.s32 %v1052, %v1054
        %v1056 = vrot.slane %v1048, %v1055
        %v1058 = vunpack.c.l.s4 1934713408
        %v1059 = vunpack.c.0.s8 %v1058
        %v1060 = vlaneseq
        %v1061 = vshrl.u32 %v1060, 7
        %v1062 = vsub.s32 %v1059, %v1061
        %v1063 = vrot.slane %v1049, %v1062
        %v1064 = vcombine.low %v1031, %v1047
        %v1065 = vcombine.high %v1031, %v1047
        %v1067 = vunpack.c.l.s4 1934713408
        %v1068 = vunpack.c.0.s8 %v1067
        %v1069 = vlaneseq
        %v1070 = vshrl.u32 %v1069, 7
        %v1071 = vsub.s32 %v1068, %v1070
        %v1072 = vrot.slane %v1064, %v1071
        %v1074 = vunpack.c.l.s4 1934713408
        %v1075 = vunpack.c.0.s8 %v1074
        %v1076 = vlaneseq
        %v1077 = vshrl.u32 %v1076, 7
        %v1078 = vsub.s32 %v1075, %v1077
        %v1079 = vrot.slane %v1065, %v1078
        %v1080 = vcombine.high %v1056, 0.0
        %v1081 = vcombine.high %v1063, 0.0
        %v1082 = vcombine.high %v1072, 0.0
        %v1083 = vcombine.high %v1079, 0.0
        %v1084 = vcombine.low %v1056, %v1063
        %v1086 = vunpack.c.l.s4 1983009808
        %v1087 = vunpack.c.0.s8 %v1086
        %v1088 = vlaneseq
        %v1089 = vshrl.u32 %v1088, 7
        %v1090 = vsub.s32 %v1087, %v1089
        %v1091 = vrot.slane %v1084, %v1090
        %v1092 = vcombine.low %v1080, %v1081
        %v1094 = vunpack.c.l.s4 1983009808
        %v1095 = vunpack.c.0.s8 %v1094
        %v1096 = vlaneseq
        %v1097 = vshrl.u32 %v1096, 7
        %v1098 = vsub.s32 %v1095, %v1097
        %v1099 = vrot.slane %v1092, %v1098
        %v1100 = vcombine.low %v1072, %v1079
        %v1102 = vunpack.c.l.s4 1983009808
        %v1103 = vunpack.c.0.s8 %v1102
        %v1104 = vlaneseq
        %v1105 = vshrl.u32 %v1104, 7
        %v1106 = vsub.s32 %v1103, %v1105
        %v1107 = vrot.slane %v1100, %v1106
        %v1108 = vcombine.low %v1082, %v1083
        %v1110 = vunpack.c.l.s4 1983009808
        %v1111 = vunpack.c.0.s8 %v1110
        %v1112 = vlaneseq
        %v1113 = vshrl.u32 %v1112, 7
        %v1114 = vsub.s32 %v1111, %v1113
        %v1115 = vrot.slane %v1108, %v1114
        %v1116 = vcombine.low %v1091, %v1099
        %v1117 = vcombine.high %v1091, %v1099
        %v1119 = vunpack.c.l.s4 1934713408
        %v1120 = vunpack.c.0.s8 %v1119
        %v1121 = vlaneseq
        %v1122 = vshrl.u32 %v1121, 7
        %v1123 = vsub.s32 %v1120, %v1122
        %v1124 = vrot.slane %v1116, %v1123
        %v1126 = vunpack.c.l.s4 1934713408
        %v1127 = vunpack.c.0.s8 %v1126
        %v1128 = vlaneseq
        %v1129 = vshrl.u32 %v1128, 7
        %v1130 = vsub.s32 %v1127, %v1129
        %v1131 = vrot.slane %v1117, %v1130
        %v1132 = vcombine.low %v1107, %v1115
        %v1133 = vcombine.high %v1107, %v1115
        %v1135 = vunpack.c.l.s4 1934713408
        %v1136 = vunpack.c.0.s8 %v1135
        %v1137 = vlaneseq
        %v1138 = vshrl.u32 %v1137, 7
        %v1139 = vsub.s32 %v1136, %v1138
        %v1140 = vrot.slane %v1132, %v1139
        %v1142 = vunpack.c.l.s4 1934713408
        %v1143 = vunpack.c.0.s8 %v1142
        %v1144 = vlaneseq
        %v1145 = vshrl.u32 %v1144, 7
        %v1146 = vsub.s32 %v1143, %v1145
        %v1147 = vrot.slane %v1133, %v1146
        %v1148 = vcombine.low %v1124, %v1140
        %v1149 = vcombine.high %v1124, %v1140
        %v1150 = vcombine.low %v1131, %v1147
        %v1151 = vcombine.high %v1131, %v1147
        %v1152 = vpack.c.bf16 %v1148, %v1148
        %v1153 = vpack.c.bf16 %v1149, %v1149
        %v1154 = vpack.c.bf16 %v1150, %v1150
        %v1155 = vpack.c.bf16 %v1151, %v1151
        %1156 = vst.msk [vmem:[%s469] sm:$0xf] %vm847, %v1152
        %1157 = vst.msk [vmem:[%s469 + $0x4] sm:$0xf] %vm847, %v1153
        %1158 = vst.msk [vmem:[%s469 + $0x8] sm:$0xf] %vm847, %v1154
        %1159 = vst.msk [vmem:[%s469 + $0xc] sm:$0xf] %vm847, %v1155
        %s1160 = sand.u32 %s251, 1
        %s1161 = scalar_lea.sflag [#allocation4], %s1160
        %s1162 = sand.u32 %s251, 1
        %s1163 = smul.addr %s1162, 16
        %s1164 = scalar_lea.vmem [#allocation8], %s1163
        %s1165 = sand.u32 %s33, 1
        %s1166 = scalar_lea.sflag [#allocation10], %s1165
        %s1167 = sand.u32 %s279, 1
        %s1168 = smul.addr %s1167, 16
        %s1169 = scalar_lea.vmem [#allocation9], %s1168
        %s1170 = sand.u32 %s33, 1
        %s1171 = scalar_lea.sflag [#allocation10], %s1170
        %s1172 = sand.u32 %s307, 1
        %s1173 = smul.addr %s1172, 16
        %s1174 = scalar_lea.vmem [#allocation11], %s1173
        // Predicated region
        $region69: #{tpu_custom_call.1} parent=55 // pred_check
          %p1175 = pneg %p261
        $region70: #{tpu_custom_call.1} parent=55 // pred_check_branch
          %1177 = sbr.rel (%p1175) target = $region72
        $region71: #{tpu_custom_call.1} parent=55 // pred_region
          %s1179 = ssub.s32 256, 256
          %1180 = vsyncadd %s1161, %s1179
          %s1181 = smul.addr %s37, 4
          %s1182 = sadd.s32 %s38, %s1181
          %s1183 = smul.addr %s1182, 64
          %s1184 = scalar_lea.hbm %s9, %s1183
          %s1185 = sshll.u32 %s1164, 4
          %s1186 = int_to_ptr.vmem [resolvable:$true] %s1185
          %1191 = dma.vmem_to_hbm [thread:$0]  %s1186, 256, %s1184, %s1161, 64, 64, 4
        $region72: #{tpu_custom_call.1} parent=55 // pred_fallthru
          _
        // Predicated region
        $region73: #{tpu_custom_call.1} parent=55 // pred_check
          %p1192 = pneg %p289
        $region74: #{tpu_custom_call.1} parent=55 // pred_check_branch
          %1194 = sbr.rel (%p1192) target = $region76
        $region75: #{tpu_custom_call.1} parent=55 // pred_region
          %s1196 = ssub.s32 256, 256
          %1197 = vsyncadd %s1166, %s1196
          %s1198 = smul.addr %s37, 4
          %s1199 = sadd.s32 %s38, %s1198
          %s1200 = smul.addr %s1199, 64
          %s1201 = scalar_lea.hbm %s10, %s1200
          %s1202 = sshll.u32 %s1169, 4
          %s1203 = int_to_ptr.vmem [resolvable:$true] %s1202
          %1208 = dma.vmem_to_hbm [thread:$0]  %s1203, 256, %s1201, %s1166, 64, 64, 4
        $region76: #{tpu_custom_call.1} parent=55 // pred_fallthru
          _
        // Predicated region
        $region77: #{tpu_custom_call.1} parent=55 // pred_check
          %p1209 = pneg %p317
        $region78: #{tpu_custom_call.1} parent=55 // pred_check_branch
          %1211 = sbr.rel (%p1209) target = $region80
        $region79: #{tpu_custom_call.1} parent=55 // pred_region
          %s1213 = ssub.s32 256, 256
          %1214 = vsyncadd %s1171, %s1213
          %s1215 = smul.addr %s37, 4
          %s1216 = sadd.s32 %s38, %s1215
          %s1217 = smul.addr %s1216, 64
          %s1218 = scalar_lea.hbm %s11, %s1217
          %s1219 = sshll.u32 %s1174, 4
          %s1220 = int_to_ptr.vmem [resolvable:$true] %s1219
          %1225 = dma.vmem_to_hbm [thread:$0]  %s1220, 256, %s1218, %s1171, 64, 64, 4
        $region80: #{tpu_custom_call.1} parent=55 // pred_fallthru
          _
      $region56: #{tpu_custom_call.1} parent=5 // pred_fallthru
        _
      %p1226 = scmp.le.s32.totalorder 2, %s28
      // Predicated region
      $region81: #{tpu_custom_call.1} parent=5 // pred_check
        %p1227 = pneg %p1226
      $region82: #{tpu_custom_call.1} parent=5 // pred_check_branch
        %1229 = sbr.rel (%p1227) target = $region84
      $region83: #{tpu_custom_call.1} parent=5 // pred_region
        %s1230 = ssub.s32 %s28, 2
        // Predicated region
        $region85: #{tpu_custom_call.1} parent=83 // pred_check
          %p1231 = pneg %p267
        $region86: #{tpu_custom_call.1} parent=83 // pred_check_branch
          %1233 = sbr.rel (%p1231) target = $region88
        $region87: #{tpu_custom_call.1} parent=83 // pred_region
          %s1234 = sand.u32 %s252, 1
          %s1235 = scalar_lea.sflag [#allocation4], %s1234
          %s1236 = sand.u32 %s252, 1
          %s1237 = smul.addr %s1236, 16
          %s1238 = scalar_lea.vmem [#allocation8], %s1237
          %1239 = dma.done %s1235, 256
        $region88: #{tpu_custom_call.1} parent=83 // pred_fallthru
          _
        // Predicated region
        $region89: #{tpu_custom_call.1} parent=83 // pred_check
          %p1240 = pneg %p295
        $region90: #{tpu_custom_call.1} parent=83 // pred_check_branch
          %1242 = sbr.rel (%p1240) target = $region92
        $region91: #{tpu_custom_call.1} parent=83 // pred_region
          %s1243 = sand.u32 %s34, 1
          %s1244 = scalar_lea.sflag [#allocation10], %s1243
          %s1245 = sand.u32 %s280, 1
          %s1246 = smul.addr %s1245, 16
          %s1247 = scalar_lea.vmem [#allocation9], %s1246
          %1248 = dma.done %s1244, 256
        $region92: #{tpu_custom_call.1} parent=83 // pred_fallthru
          _
        // Predicated region
        $region93: #{tpu_custom_call.1} parent=83 // pred_check
          %p1249 = pneg %p323
        $region94: #{tpu_custom_call.1} parent=83 // pred_check_branch
          %1251 = sbr.rel (%p1249) target = $region96
        $region95: #{tpu_custom_call.1} parent=83 // pred_region
          %s1252 = sand.u32 %s34, 1
          %s1253 = scalar_lea.sflag [#allocation10], %s1252
          %s1254 = sand.u32 %s308, 1
          %s1255 = smul.addr %s1254, 16
          %s1256 = scalar_lea.vmem [#allocation11], %s1255
          %1257 = dma.done %s1253, 256
        $region96: #{tpu_custom_call.1} parent=83 // pred_fallthru
          _
      $region84: #{tpu_custom_call.1} parent=5 // pred_fallthru
        _
    $region6: #{tpu_custom_call.1} parent=1 // loop_footer
      %s32 = sadd.s32 1, %s28
    $region7: #{tpu_custom_call.1} parent=1 // loop_footer_branch
      %27 = sbr.rel target = $region3
    $region8: #{tpu_custom_call.1} parent=1 // loop_exit
      _
    %1258 = vsyncpa [#allocation3], 1
    %s1259 = scalar_lea.sflag [#allocation3], 1
    %1260 = vsyncpa %s1259, 1
    %1261 = vsyncpa [#allocation6], 1
    %1262 = vsyncpa [#allocation4], 1
    %s1263 = scalar_lea.sflag [#allocation4], 1
    %1264 = vsyncpa %s1263, 1
    %1265 = vsyncpa [#allocation10], 1
    %s1266 = scalar_lea.sflag [#allocation10], 1
    %1267 = vsyncpa %s1266, 1

</llo_original>
